<compile_context>
chip_gen: v7x
topology: tpu7x:2x2x1
jax: 0.10.0
libtpu: 0.0.40
codegen_flags: <defaults>
</compile_context>

<pallas_src>
import jax
import jax.numpy as jnp
from jax.experimental import pallas as pl
from jax.experimental.pallas import tpu as pltpu

# ---- small, module-consistent config (stand-in for ViT-L/14 text tower) ----
B = 2            # batch (number of prompts)
S = 8            # max_length (small stand-in for 77)
D = 32           # hidden size (small stand-in for 768)
H = 4            # attention heads
HD = D // H      # head dim
FF = 4 * D       # MLP intermediate size
VOCAB = 1000     # vocab size (small stand-in for 49408)
N_LAYERS = 2     # encoder layers (small stand-in for 12)
EPS = 1e-5
NEG_INF = -1e30  # additive-mask fill (safe in f32)

# packed per-layer vector slab: (NUM_VEC, VW); each row holds one 1-D param
VW = max(3 * D, FF, D)     # 128
NUM_VEC = 8                # padded to a full sublane group
ROW_BQKV, ROW_BO, ROW_B1, ROW_B2 = 0, 1, 2, 3


def _normalize(x):
    """Mean/variance normalization only (LN gamma/beta are folded into weights)."""
    mu = jnp.mean(x, axis=-1, keepdims=True)
    var = jnp.mean((x - mu) ** 2, axis=-1, keepdims=True)
    return (x - mu) * jax.lax.rsqrt(var + EPS)


# ---------------- fused Pallas kernel: all layers + final LN ----------------

def clip_stack_kernel(x_ref, wqkv_ref, wo_ref, w1_ref, w2_ref, vec_ref,
                      fin_ref, out_ref, attn_ref):
    """grid = (batch, layer). out_ref holds this batch element's resident activation."""
    li = pl.program_id(1)
    last = pl.num_programs(1) - 1

    @pl.when(li == 0)
    def _init():
        out_ref[...] = x_ref[...]            # seed the resident activation

    x = out_ref[...]                         # (S, D) f32

    vec = vec_ref[...]                       # (NUM_VEC, VW) packed 1-D params (f32)
    bqkv = vec[ROW_BQKV:ROW_BQKV + 1, :3 * D]
    bo = vec[ROW_BO:ROW_BO + 1, :D]
    b1 = vec[ROW_B1:ROW_B1 + 1, :FF]
    b2 = vec[ROW_B2:ROW_B2 + 1, :D]

    # --- self-attention block (pre-LN; gamma and 1/sqrt(HD) folded into Wqkv) ---
    h = _normalize(x)
    qkv = jnp.dot(h.astype(jnp.bfloat16), wqkv_ref[...],
                  preferred_element_type=jnp.float32) + bqkv         # (S, 3D) f32

    # causal mask built in-kernel (cheap iota/compare; no HBM mask input)
    row = jax.lax.broadcasted_iota(jnp.int32, (S, S), 0)
    col = jax.lax.broadcasted_iota(jnp.int32, (S, S), 1)
    mask = jnp.where(col <= row, jnp.float32(0.0), jnp.float32(NEG_INF))

    for hi in range(H):                      # static loop; every dot is 2-D (MXU)
        qh = qkv[:, hi * HD:(hi + 1) * HD]                  # already carries HD**-0.5
        kh = qkv[:, D + hi * HD:D + (hi + 1) * HD]
        vh = qkv[:, 2 * D + hi * HD:2 * D + (hi + 1) * HD]
        s = jax.lax.dot_general(qh.astype(jnp.bfloat16), kh.astype(jnp.bfloat16),
                                (((1,), (1,)), ((), ())),
                                preferred_element_type=jnp.float32)  # (S, S)
        s = s + mask
        s = s - jnp.max(s, axis=-1, keepdims=True)
        p = jnp.exp(s)
        p = p * pl.reciprocal(jnp.sum(p, axis=-1, keepdims=True), approx=True)
        # head output written straight into the scratch slice (no concat relayout)
        attn_ref[:, hi * HD:(hi + 1) * HD] = jnp.dot(
            p.astype(jnp.bfloat16), vh.astype(jnp.bfloat16),
            preferred_element_type=jnp.float32)

    attn = jnp.dot(attn_ref[...].astype(jnp.bfloat16), wo_ref[...],
                   preferred_element_type=jnp.float32) + bo
    x = x + attn

    # --- MLP block (pre-LN; gamma folded into W1; quick-GELU in f32) ---
    h2 = _normalize(x)
    f = jnp.dot(h2.astype(jnp.bfloat16), w1_ref[...],
                preferred_element_type=jnp.float32) + b1
    f = f * jax.nn.sigmoid(1.702 * f)        # quick_gelu (CLIP activation)
    f = jnp.dot(f.astype(jnp.bfloat16), w2_ref[...],
                preferred_element_type=jnp.float32) + b2
    x = x + f

    fin = fin_ref[...]                       # (2, D): final LN gamma / beta

    @pl.when(li == last)
    def _final():                            # fold final LayerNorm into last step
        out_ref[...] = _normalize(x) * fin[0:1, :] + fin[1:2, :]

    @pl.when(li != last)
    def _store():
        out_ref[...] = x


# ---------------- wrapper ----------------

def clip_encoder_stack(x, params):
    """x: (B, S, D) f32 -> (B, S, D) f32: all encoder layers + final LN, one pallas_call."""
    sq = pl.Squeezed()
    return pl.pallas_call(
        clip_stack_kernel,
        out_shape=jax.ShapeDtypeStruct((B, S, D), jnp.float32),
        grid=(B, N_LAYERS),
        in_specs=[
            pl.BlockSpec((sq, S, D), lambda b, l: (b, 0, 0)),           # x (per batch elem)
            pl.BlockSpec((sq, D, 3 * D), lambda b, l: (l, 0, 0)),       # fused Wqkv (bf16)
            pl.BlockSpec((sq, D, D), lambda b, l: (l, 0, 0)),           # Wo (bf16)
            pl.BlockSpec((sq, D, FF), lambda b, l: (l, 0, 0)),          # W1 (bf16)
            pl.BlockSpec((sq, FF, D), lambda b, l: (l, 0, 0)),          # W2 (bf16)
            pl.BlockSpec((sq, NUM_VEC, VW), lambda b, l: (l, 0, 0)),    # packed 1-D params
            pl.BlockSpec((2, D), lambda b, l: (0, 0)),                  # final LN (resident)
        ],
        out_specs=pl.BlockSpec((sq, S, D), lambda b, l: (b, 0, 0)),     # resident accumulator
        scratch_shapes=[pltpu.VMEM((S, D), jnp.float32)],               # per-head attn slab
        compiler_params=pltpu.CompilerParams(
            dimension_semantics=("parallel", "arbitrary"),
            # toy shapes need ~1 MiB; set explicitly -- at real ViT-L/14 scale
            # re-budget per chip (bf16 weights stay well inside v7x's 64 MiB).
            vmem_limit_bytes=48 * 1024 * 1024),
    )(x, params["wqkv"], params["wo"], params["w1"], params["w2"],
      params["vec"], params["final_ln"])


def clip_text_embedder(token_ids, params):
    """token_ids: (B, S) int32 -> last_hidden_state (B, S, D) float32."""
    # Embedding lookup (gather) + learned positional embedding: plain-JAX glue.
    x = jnp.take(params["tok_emb"], token_ids, axis=0) + params["pos_emb"][None, :, :]
    return clip_encoder_stack(x, params)


# ---------------- parameter construction & offline folding ----------------

def _pack_vec_slab(bqkv, bo, b1, b2):
    slab = jnp.zeros((NUM_VEC, VW), jnp.float32)
    slab = slab.at[ROW_BQKV, :3 * D].set(bqkv)
    slab = slab.at[ROW_BO, :D].set(bo)
    slab = slab.at[ROW_B1, :FF].set(b1)
    slab = slab.at[ROW_B2, :D].set(b2)
    return slab


def init_raw_params(key):
    """Unfolded f32 parameters in the standard CLIPTextModel layout."""
    std = 0.02
    keys = iter(jax.random.split(key, 4 + N_LAYERS * 16))
    raw = {
        "tok_emb": jax.random.normal(next(keys), (VOCAB, D), jnp.float32) * std,
        "pos_emb": jax.random.normal(next(keys), (S, D), jnp.float32) * std,
        "final_g": 1.0 + 0.1 * jax.random.normal(next(keys), (D,), jnp.float32),
        "final_b": 0.1 * jax.random.normal(next(keys), (D,), jnp.float32),
        "layers": [],
    }
    for _ in range(N_LAYERS):
        L = {
            "wq": jax.random.normal(next(keys), (D, D), jnp.float32) * std,
            "wk": jax.random.normal(next(keys), (D, D), jnp.float32) * std,
            "wv": jax.random.normal(next(keys), (D, D), jnp.float32) * std,
            "wo": jax.random.normal(next(keys), (D, D), jnp.float32) * std,
            "w1": jax.random.normal(next(keys), (D, FF), jnp.float32) * std,
            "w2": jax.random.normal(next(keys), (FF, D), jnp.float32) * std,
            "bq": 0.02 * jax.random.normal(next(keys), (D,), jnp.float32),
            "bk": 0.02 * jax.random.normal(next(keys), (D,), jnp.float32),
            "bv": 0.02 * jax.random.normal(next(keys), (D,), jnp.float32),
            "bo": 0.02 * jax.random.normal(next(keys), (D,), jnp.float32),
            "b1": 0.02 * jax.random.normal(next(keys), (FF,), jnp.float32),
            "b2": 0.02 * jax.random.normal(next(keys), (D,), jnp.float32),
            "ln1_g": 1.0 + 0.2 * jax.random.normal(next(keys), (D,), jnp.float32),
            "ln1_b": 0.3 * jax.random.normal(next(keys), (D,), jnp.float32),
            "ln2_g": 1.0 + 0.2 * jax.random.normal(next(keys), (D,), jnp.float32),
            "ln2_b": 0.3 * jax.random.normal(next(keys), (D,), jnp.float32),
        }
        raw["layers"].append(L)
    return raw


def fold_params(raw, weight_dtype=jnp.bfloat16):
    """Fold LN1/LN2 gamma+beta and the 1/sqrt(HD) scale into Wqkv/W1 (and their
    biases), stack per-layer tensors, cast matmul weights to `weight_dtype`,
    and pack all 1-D params into one (NUM_VEC, VW) slab per layer."""
    scale = HD ** -0.5
    wqkv_l, wo_l, w1_l, w2_l, vec_l = [], [], [], [], []
    for L in raw["layers"]:
        wq = (L["ln1_g"][:, None] * L["wq"]) * scale
        bq = (L["ln1_b"] @ L["wq"] + L["bq"]) * scale
        wk = L["ln1_g"][:, None] * L["wk"]
        bk = L["ln1_b"] @ L["wk"] + L["bk"]
        wv = L["ln1_g"][:, None] * L["wv"]
        bv = L["ln1_b"] @ L["wv"] + L["bv"]
        w1 = L["ln2_g"][:, None] * L["w1"]
        b1 = L["ln2_b"] @ L["w1"] + L["b1"]
        wqkv_l.append(jnp.concatenate([wq, wk, wv], axis=1))
        wo_l.append(L["wo"])
        w1_l.append(w1)
        w2_l.append(L["w2"])
        vec_l.append(_pack_vec_slab(jnp.concatenate([bq, bk, bv]), L["bo"], b1, L["b2"]))
    return {
        "tok_emb": raw["tok_emb"],
        "pos_emb": raw["pos_emb"],
        "wqkv": jnp.stack(wqkv_l).astype(weight_dtype),   # (N_LAYERS, D, 3D)
        "wo": jnp.stack(wo_l).astype(weight_dtype),       # (N_LAYERS, D, D)
        "w1": jnp.stack(w1_l).astype(weight_dtype),       # (N_LAYERS, D, FF)
        "w2": jnp.stack(w2_l).astype(weight_dtype),       # (N_LAYERS, FF, D)
        "vec": jnp.stack(vec_l),                          # (N_LAYERS, NUM_VEC, VW) f32
        "final_ln": jnp.stack([raw["final_g"], raw["final_b"]]),  # (2, D) f32
    }


# ---------------- pure-JAX references (correctness checks) ----------------

def _ln(x, g, b):
    mu = jnp.mean(x, axis=-1, keepdims=True)
    var = jnp.mean((x - mu) ** 2, axis=-1, keepdims=True)
    return (x - mu) * jax.lax.rsqrt(var + EPS) * g + b


def _ref_forward(token_ids, raw):
    """Standard (unfolded, f32) CLIP text-encoder forward."""
    x = jnp.take(raw["tok_emb"], token_ids, axis=0) + raw["pos_emb"][None]
    causal = jnp.tril(jnp.ones((S, S), bool))
    for L in raw["layers"]:
        h = _ln(x, L["ln1_g"], L["ln1_b"])
        q = (h @ L["wq"] + L["bq"]).reshape(B, S, H, HD).transpose(0, 2, 1, 3)
        k = (h @ L["wk"] + L["bk"]).reshape(B, S, H, HD).transpose(0, 2, 1, 3)
        v = (h @ L["wv"] + L["bv"]).reshape(B, S, H, HD).transpose(0, 2, 1, 3)
        s = jnp.einsum("bhqd,bhkd->bhqk", q, k) * (HD ** -0.5)
        s = jnp.where(causal[None, None], s, NEG_INF)
        p = jax.nn.softmax(s, axis=-1)
        a = jnp.einsum("bhqk,bhkd->bhqd", p, v).transpose(0, 2, 1, 3).reshape(B, S, D)
        x = x + a @ L["wo"] + L["bo"]
        h2 = _ln(x, L["ln2_g"], L["ln2_b"])
        f = h2 @ L["w1"] + L["b1"]
        f = f * jax.nn.sigmoid(1.702 * f)
        x = x + f @ L["w2"] + L["b2"]
    return _ln(x, raw["final_g"], raw["final_b"])


def _folded_forward(token_ids, p):
    """Pure-JAX forward using the FOLDED params (kernel math, exact softmax);
    with f32 weights this validates the offline folding itself."""
    wqkv = p["wqkv"].astype(jnp.float32)
    wo = p["wo"].astype(jnp.float32)
    w1 = p["w1"].astype(jnp.float32)
    w2 = p["w2"].astype(jnp.float32)
    x = jnp.take(p["tok_emb"], token_ids, axis=0) + p["pos_emb"][None]
    causal = jnp.tril(jnp.ones((S, S), bool))
    for li in range(N_LAYERS):
        vec = p["vec"][li]
        h = _normalize(x)
        qkv = h @ wqkv[li] + vec[ROW_BQKV, :3 * D]
        q, k, v = jnp.split(qkv, 3, axis=-1)
        q = q.reshape(B, S, H, HD).transpose(0, 2, 1, 3)   # scale already folded in
        k = k.reshape(B, S, H, HD).transpose(0, 2, 1, 3)
        v = v.reshape(B, S, H, HD).transpose(0, 2, 1, 3)
        s = jnp.einsum("bhqd,bhkd->bhqk", q, k)
        s = jnp.where(causal[None, None], s, NEG_INF)
        p_att = jax.nn.softmax(s, axis=-1)
        a = jnp.einsum("bhqk,bhkd->bhqd", p_att, v).transpose(0, 2, 1, 3).reshape(B, S, D)
        x = x + a @ wo[li] + vec[ROW_BO, :D]
        h2 = _normalize(x)
        f = h2 @ w1[li] + vec[ROW_B1, :FF]
        f = f * jax.nn.sigmoid(1.702 * f)
        x = x + f @ w2[li] + vec[ROW_B2, :D]
    fin = p["final_ln"]
    return _normalize(x) * fin[0] + fin[1]


if __name__ == "__main__":
    key = jax.random.PRNGKey(0)
    k_tok, k_params = jax.random.split(key)
    raw = init_raw_params(k_params)
    params = fold_params(raw, weight_dtype=jnp.bfloat16)
    # Pre-tokenized prompts (the tokenizer itself is not a tensor op).
    token_ids = jax.random.randint(k_tok, (B, S), 0, VOCAB, dtype=jnp.int32)

    fwd = jax.jit(clip_text_embedder)
    out = jax.block_until_ready(fwd(token_ids, params))
    assert out.shape == (B, S, D) and out.dtype == jnp.float32

    ref = _ref_forward(token_ids, raw)

    # (1) validate the offline gamma/beta/scale folding exactly (f32, pure JAX)
    folded_ref = _folded_forward(token_ids, fold_params(raw, weight_dtype=jnp.float32))
    fold_err = float(jnp.max(jnp.abs(folded_ref - ref)))
    assert fold_err < 1e-3, f"weight folding mismatch: max abs err {fold_err}"

    # (2) kernel vs. the unfolded f32 reference; the looser tolerance absorbs
    #     bf16 weight/operand rounding and the approximate softmax reciprocal.
    max_err = float(jnp.max(jnp.abs(out - ref)))
    assert max_err < 1e-1, f"mismatch vs reference: max abs err {max_err}"
    print("KERNEL_OK")
</pallas_src>

<mosaic_0001>
module attributes {stable_mosaic.version = 11 : i64} {
  func.func @clip_stack_kernel(%arg0: i32, %arg1: i32, %arg2: memref<1x8x32xf32, #tpu.memory_space<vmem>>, %arg3: memref<1x32x96xbf16, #tpu.memory_space<vmem>>, %arg4: memref<1x32x32xbf16, #tpu.memory_space<vmem>>, %arg5: memref<1x32x128xbf16, #tpu.memory_space<vmem>>, %arg6: memref<1x128x32xbf16, #tpu.memory_space<vmem>>, %arg7: memref<1x8x128xf32, #tpu.memory_space<vmem>>, %arg8: memref<2x32xf32, #tpu.memory_space<vmem>>, %arg9: memref<1x8x32xf32, #tpu.memory_space<vmem>>, %arg10: memref<8x32xf32, #tpu.memory_space<vmem>>) attributes {dimension_semantics = [#tpu.dimension_semantics<parallel>, #tpu.dimension_semantics<arbitrary>], iteration_bounds = array<i64: 2, 2>, scalar_prefetch = 0 : i64, scratch_operands = 1 : i64, tpu.core_type = #tpu.core_type<tc>, window_params = [{transform_indices = @transform_0, window_bounds = array<i64: 1, 8, 32>}, {transform_indices = @transform_1, window_bounds = array<i64: 1, 32, 96>}, {transform_indices = @transform_2, window_bounds = array<i64: 1, 32, 32>}, {transform_indices = @transform_3, window_bounds = array<i64: 1, 32, 128>}, {transform_indices = @transform_4, window_bounds = array<i64: 1, 128, 32>}, {transform_indices = @transform_5, window_bounds = array<i64: 1, 8, 128>}, {pipeline_mode = #tpu.pipeline_mode<synchronous>, transform_indices = @transform_6, window_bounds = array<i64: 2, 32>}, {transform_indices = @transform_7, window_bounds = array<i64: 1, 8, 32>}]} {
    %c0_i32 = arith.constant 0 : i32
    %0 = arith.cmpi eq, %arg1, %c0_i32 : i32
    %1 = arith.extui %0 : i1 to i32
    %c0_i32_0 = arith.constant 0 : i32
    %2 = arith.cmpi ne, %1, %c0_i32_0 : i32
    scf.if %2 {
      %c0_63 = arith.constant 0 : index
      %c0_64 = arith.constant 0 : index
      %c0_65 = arith.constant 0 : index
      %179 = vector.load %arg2[%c0_63, %c0_64, %c0_65] : memref<1x8x32xf32, #tpu.memory_space<vmem>>, vector<1x8x32xf32>
      %180 = vector.shape_cast %179 : vector<1x8x32xf32> to vector<8x32xf32>
      %c0_66 = arith.constant 0 : index
      %c0_67 = arith.constant 0 : index
      %c0_68 = arith.constant 0 : index
      %181 = vector.load %arg9[%c0_66, %c0_67, %c0_68] : memref<1x8x32xf32, #tpu.memory_space<vmem>>, vector<1x8x32xf32>
      %182 = vector.shape_cast %181 : vector<1x8x32xf32> to vector<8x32xf32>
      %183 = vector.shape_cast %180 : vector<8x32xf32> to vector<1x8x32xf32>
      tpu.vector_store %arg9[%c0_66, %c0_67, %c0_68], %183 {strides = array<i32>} : memref<1x8x32xf32, #tpu.memory_space<vmem>>, vector<1x8x32xf32>,
    } else {
    }
    %c0 = arith.constant 0 : index
    %c0_1 = arith.constant 0 : index
    %c0_2 = arith.constant 0 : index
    %3 = vector.load %arg9[%c0, %c0_1, %c0_2] : memref<1x8x32xf32, #tpu.memory_space<vmem>>, vector<1x8x32xf32>
    %4 = vector.shape_cast %3 : vector<1x8x32xf32> to vector<8x32xf32>
    %c0_3 = arith.constant 0 : index
    %c0_4 = arith.constant 0 : index
    %c0_5 = arith.constant 0 : index
    %5 = vector.load %arg7[%c0_3, %c0_4, %c0_5] : memref<1x8x128xf32, #tpu.memory_space<vmem>>, vector<1x8x128xf32>
    %6 = vector.shape_cast %5 : vector<1x8x128xf32> to vector<8x128xf32>
    %7 = vector.extract_strided_slice %6 {offsets = [0, 0], sizes = [1, 96], strides = [1, 1]} : vector<8x128xf32> to vector<1x96xf32>
    %8 = vector.extract_strided_slice %6 {offsets = [1, 0], sizes = [1, 32], strides = [1, 1]} : vector<8x128xf32> to vector<1x32xf32>
    %9 = vector.extract_strided_slice %6 {offsets = [2, 0], sizes = [1, 128], strides = [1, 1]} : vector<8x128xf32> to vector<1x128xf32>
    %10 = vector.extract_strided_slice %6 {offsets = [3, 0], sizes = [1, 32], strides = [1, 1]} : vector<8x128xf32> to vector<1x32xf32>
    %cst = arith.constant dense<0.000000e+00> : vector<8xf32>
    %11 = vector.multi_reduction <add>, %4, %cst [1] : vector<8x32xf32> to vector<8xf32>
    %12 = vector.shape_cast %11 : vector<8xf32> to vector<8x1xf32>
    %cst_6 = arith.constant 3.200000e+01 : f32
    %13 = vector.broadcast %cst_6 : f32 to vector<8x1xf32>
    %14 = arith.divf %12, %13 : vector<8x1xf32>
    %15 = vector.broadcast %14 : vector<8x1xf32> to vector<8x32xf32>
    %16 = arith.subf %4, %15 : vector<8x32xf32>
    %17 = arith.mulf %16, %16 : vector<8x32xf32>
    %cst_7 = arith.constant dense<0.000000e+00> : vector<8xf32>
    %18 = vector.multi_reduction <add>, %17, %cst_7 [1] : vector<8x32xf32> to vector<8xf32>
    %19 = vector.shape_cast %18 : vector<8xf32> to vector<8x1xf32>
    %cst_8 = arith.constant 3.200000e+01 : f32
    %20 = vector.broadcast %cst_8 : f32 to vector<8x1xf32>
    %21 = arith.divf %19, %20 : vector<8x1xf32>
    %22 = vector.broadcast %14 : vector<8x1xf32> to vector<8x32xf32>
    %23 = arith.subf %4, %22 : vector<8x32xf32>
    %cst_9 = arith.constant 9.99999974E-6 : f32
    %24 = vector.broadcast %cst_9 : f32 to vector<8x1xf32>
    %25 = arith.addf %21, %24 : vector<8x1xf32>
    %26 = math.rsqrt %25 : vector<8x1xf32>
    %27 = vector.broadcast %26 : vector<8x1xf32> to vector<8x32xf32>
    %28 = arith.mulf %23, %27 : vector<8x32xf32>
    %29 = arith.truncf %28 : vector<8x32xf32> to vector<8x32xbf16>
    %c0_10 = arith.constant 0 : index
    %c0_11 = arith.constant 0 : index
    %c0_12 = arith.constant 0 : index
    %30 = vector.load %arg3[%c0_10, %c0_11, %c0_12] : memref<1x32x96xbf16, #tpu.memory_space<vmem>>, vector<1x32x96xbf16>
    %31 = vector.shape_cast %30 : vector<1x32x96xbf16> to vector<32x96xbf16>
    %cst_13 = arith.constant dense<0.000000e+00> : vector<8x96xf32>
    %32 = tpu.matmul %29, %31, %cst_13 {dimension_numbers = #tpu.dot_dimension_numbers<[1], [0], [0], [1], [0, 0, 1, 1], [], []>} : vector<8x32xbf16>, vector<32x96xbf16>, vector<8x96xf32> -> vector<8x96xf32>
    %33 = vector.broadcast %7 : vector<1x96xf32> to vector<8x96xf32>
    %34 = arith.addf %32, %33 : vector<8x96xf32>
    %35 = tpu.iota {dimensions = array<i32: 0>} : vector<8x8xi32>
    %36 = tpu.iota {dimensions = array<i32: 1>} : vector<8x8xi32>
    %37 = arith.cmpi sle, %36, %35 : vector<8x8xi32>
    %cst_14 = arith.constant 0.000000e+00 : f32
    %cst_15 = arith.constant -1.000000e+30 : f32
    %38 = vector.broadcast %cst_14 : f32 to vector<8x8xf32>
    %39 = vector.broadcast %cst_15 : f32 to vector<8x8xf32>
    %40 = arith.select %37, %38, %39 : vector<8x8xi1>, vector<8x8xf32>
    %41 = vector.extract_strided_slice %34 {offsets = [0, 0], sizes = [8, 8], strides = [1, 1]} : vector<8x96xf32> to vector<8x8xf32>
    %42 = vector.extract_strided_slice %34 {offsets = [0, 32], sizes = [8, 8], strides = [1, 1]} : vector<8x96xf32> to vector<8x8xf32>
    %43 = vector.extract_strided_slice %34 {offsets = [0, 64], sizes = [8, 8], strides = [1, 1]} : vector<8x96xf32> to vector<8x8xf32>
    %44 = arith.truncf %41 : vector<8x8xf32> to vector<8x8xbf16>
    %45 = arith.truncf %42 : vector<8x8xf32> to vector<8x8xbf16>
    %cst_16 = arith.constant dense<0.000000e+00> : vector<8x8xf32>
    %46 = tpu.matmul %44, %45, %cst_16 {dimension_numbers = #tpu.dot_dimension_numbers<[1], [1], [0], [0], [0, 0, 1, 0], [], []>} : vector<8x8xbf16>, vector<8x8xbf16>, vector<8x8xf32> -> vector<8x8xf32>
    %47 = arith.addf %46, %40 : vector<8x8xf32>
    %cst_17 = arith.constant dense<0xFF800000> : vector<8xf32>
    %48 = vector.multi_reduction <maximumf>, %47, %cst_17 [1] : vector<8x8xf32> to vector<8xf32>
    %49 = vector.shape_cast %48 : vector<8xf32> to vector<8x1xf32>
    %50 = vector.broadcast %49 : vector<8x1xf32> to vector<8x8xf32>
    %51 = arith.subf %47, %50 : vector<8x8xf32>
    %52 = math.exp %51 : vector<8x8xf32>
    %cst_18 = arith.constant dense<0.000000e+00> : vector<8xf32>
    %53 = vector.multi_reduction <add>, %52, %cst_18 [1] : vector<8x8xf32> to vector<8xf32>
    %54 = vector.shape_cast %53 : vector<8xf32> to vector<8x1xf32>
    %55 = tpu.reciprocal %54 {approx = true} : vector<8x1xf32> -> vector<8x1xf32>
    %56 = vector.broadcast %55 : vector<8x1xf32> to vector<8x8xf32>
    %57 = arith.mulf %52, %56 : vector<8x8xf32>
    %58 = arith.truncf %57 : vector<8x8xf32> to vector<8x8xbf16>
    %59 = arith.truncf %43 : vector<8x8xf32> to vector<8x8xbf16>
    %cst_19 = arith.constant dense<0.000000e+00> : vector<8x8xf32>
    %60 = tpu.matmul %58, %59, %cst_19 {dimension_numbers = #tpu.dot_dimension_numbers<[1], [0], [0], [1], [0, 0, 1, 1], [], []>} : vector<8x8xbf16>, vector<8x8xbf16>, vector<8x8xf32> -> vector<8x8xf32>
    %c0_20 = arith.constant 0 : index
    %c0_21 = arith.constant 0 : index
    %61 = vector.load %arg10[%c0_20, %c0_21] : memref<8x32xf32, #tpu.memory_space<vmem>>, vector<8x8xf32>
    tpu.vector_store %arg10[%c0_20, %c0_21], %60 {strides = array<i32>} : memref<8x32xf32, #tpu.memory_space<vmem>>, vector<8x8xf32>,
    %62 = vector.extract_strided_slice %34 {offsets = [0, 8], sizes = [8, 8], strides = [1, 1]} : vector<8x96xf32> to vector<8x8xf32>
    %63 = vector.extract_strided_slice %34 {offsets = [0, 40], sizes = [8, 8], strides = [1, 1]} : vector<8x96xf32> to vector<8x8xf32>
    %64 = vector.extract_strided_slice %34 {offsets = [0, 72], sizes = [8, 8], strides = [1, 1]} : vector<8x96xf32> to vector<8x8xf32>
    %65 = arith.truncf %62 : vector<8x8xf32> to vector<8x8xbf16>
    %66 = arith.truncf %63 : vector<8x8xf32> to vector<8x8xbf16>
    %cst_22 = arith.constant dense<0.000000e+00> : vector<8x8xf32>
    %67 = tpu.matmul %65, %66, %cst_22 {dimension_numbers = #tpu.dot_dimension_numbers<[1], [1], [0], [0], [0, 0, 1, 0], [], []>} : vector<8x8xbf16>, vector<8x8xbf16>, vector<8x8xf32> -> vector<8x8xf32>
    %68 = arith.addf %67, %40 : vector<8x8xf32>
    %cst_23 = arith.constant dense<0xFF800000> : vector<8xf32>
    %69 = vector.multi_reduction <maximumf>, %68, %cst_23 [1] : vector<8x8xf32> to vector<8xf32>
    %70 = vector.shape_cast %69 : vector<8xf32> to vector<8x1xf32>
    %71 = vector.broadcast %70 : vector<8x1xf32> to vector<8x8xf32>
    %72 = arith.subf %68, %71 : vector<8x8xf32>
    %73 = math.exp %72 : vector<8x8xf32>
    %cst_24 = arith.constant dense<0.000000e+00> : vector<8xf32>
    %74 = vector.multi_reduction <add>, %73, %cst_24 [1] : vector<8x8xf32> to vector<8xf32>
    %75 = vector.shape_cast %74 : vector<8xf32> to vector<8x1xf32>
    %76 = tpu.reciprocal %75 {approx = true} : vector<8x1xf32> -> vector<8x1xf32>
    %77 = vector.broadcast %76 : vector<8x1xf32> to vector<8x8xf32>
    %78 = arith.mulf %73, %77 : vector<8x8xf32>
    %79 = arith.truncf %78 : vector<8x8xf32> to vector<8x8xbf16>
    %80 = arith.truncf %64 : vector<8x8xf32> to vector<8x8xbf16>
    %cst_25 = arith.constant dense<0.000000e+00> : vector<8x8xf32>
    %81 = tpu.matmul %79, %80, %cst_25 {dimension_numbers = #tpu.dot_dimension_numbers<[1], [0], [0], [1], [0, 0, 1, 1], [], []>} : vector<8x8xbf16>, vector<8x8xbf16>, vector<8x8xf32> -> vector<8x8xf32>
    %c0_26 = arith.constant 0 : index
    %c8 = arith.constant 8 : index
    %82 = vector.load %arg10[%c0_26, %c8] : memref<8x32xf32, #tpu.memory_space<vmem>>, vector<8x8xf32>
    tpu.vector_store %arg10[%c0_26, %c8], %81 {strides = array<i32>} : memref<8x32xf32, #tpu.memory_space<vmem>>, vector<8x8xf32>,
    %83 = vector.extract_strided_slice %34 {offsets = [0, 16], sizes = [8, 8], strides = [1, 1]} : vector<8x96xf32> to vector<8x8xf32>
    %84 = vector.extract_strided_slice %34 {offsets = [0, 48], sizes = [8, 8], strides = [1, 1]} : vector<8x96xf32> to vector<8x8xf32>
    %85 = vector.extract_strided_slice %34 {offsets = [0, 80], sizes = [8, 8], strides = [1, 1]} : vector<8x96xf32> to vector<8x8xf32>
    %86 = arith.truncf %83 : vector<8x8xf32> to vector<8x8xbf16>
    %87 = arith.truncf %84 : vector<8x8xf32> to vector<8x8xbf16>
    %cst_27 = arith.constant dense<0.000000e+00> : vector<8x8xf32>
    %88 = tpu.matmul %86, %87, %cst_27 {dimension_numbers = #tpu.dot_dimension_numbers<[1], [1], [0], [0], [0, 0, 1, 0], [], []>} : vector<8x8xbf16>, vector<8x8xbf16>, vector<8x8xf32> -> vector<8x8xf32>
    %89 = arith.addf %88, %40 : vector<8x8xf32>
    %cst_28 = arith.constant dense<0xFF800000> : vector<8xf32>
    %90 = vector.multi_reduction <maximumf>, %89, %cst_28 [1] : vector<8x8xf32> to vector<8xf32>
    %91 = vector.shape_cast %90 : vector<8xf32> to vector<8x1xf32>
    %92 = vector.broadcast %91 : vector<8x1xf32> to vector<8x8xf32>
    %93 = arith.subf %89, %92 : vector<8x8xf32>
    %94 = math.exp %93 : vector<8x8xf32>
    %cst_29 = arith.constant dense<0.000000e+00> : vector<8xf32>
    %95 = vector.multi_reduction <add>, %94, %cst_29 [1] : vector<8x8xf32> to vector<8xf32>
    %96 = vector.shape_cast %95 : vector<8xf32> to vector<8x1xf32>
    %97 = tpu.reciprocal %96 {approx = true} : vector<8x1xf32> -> vector<8x1xf32>
    %98 = vector.broadcast %97 : vector<8x1xf32> to vector<8x8xf32>
    %99 = arith.mulf %94, %98 : vector<8x8xf32>
    %100 = arith.truncf %99 : vector<8x8xf32> to vector<8x8xbf16>
    %101 = arith.truncf %85 : vector<8x8xf32> to vector<8x8xbf16>
    %cst_30 = arith.constant dense<0.000000e+00> : vector<8x8xf32>
    %102 = tpu.matmul %100, %101, %cst_30 {dimension_numbers = #tpu.dot_dimension_numbers<[1], [0], [0], [1], [0, 0, 1, 1], [], []>} : vector<8x8xbf16>, vector<8x8xbf16>, vector<8x8xf32> -> vector<8x8xf32>
    %c0_31 = arith.constant 0 : index
    %c16 = arith.constant 16 : index
    %103 = vector.load %arg10[%c0_31, %c16] : memref<8x32xf32, #tpu.memory_space<vmem>>, vector<8x8xf32>
    tpu.vector_store %arg10[%c0_31, %c16], %102 {strides = array<i32>} : memref<8x32xf32, #tpu.memory_space<vmem>>, vector<8x8xf32>,
    %104 = vector.extract_strided_slice %34 {offsets = [0, 24], sizes = [8, 8], strides = [1, 1]} : vector<8x96xf32> to vector<8x8xf32>
    %105 = vector.extract_strided_slice %34 {offsets = [0, 56], sizes = [8, 8], strides = [1, 1]} : vector<8x96xf32> to vector<8x8xf32>
    %106 = vector.extract_strided_slice %34 {offsets = [0, 88], sizes = [8, 8], strides = [1, 1]} : vector<8x96xf32> to vector<8x8xf32>
    %107 = arith.truncf %104 : vector<8x8xf32> to vector<8x8xbf16>
    %108 = arith.truncf %105 : vector<8x8xf32> to vector<8x8xbf16>
    %cst_32 = arith.constant dense<0.000000e+00> : vector<8x8xf32>
    %109 = tpu.matmul %107, %108, %cst_32 {dimension_numbers = #tpu.dot_dimension_numbers<[1], [1], [0], [0], [0, 0, 1, 0], [], []>} : vector<8x8xbf16>, vector<8x8xbf16>, vector<8x8xf32> -> vector<8x8xf32>
    %110 = arith.addf %109, %40 : vector<8x8xf32>
    %cst_33 = arith.constant dense<0xFF800000> : vector<8xf32>
    %111 = vector.multi_reduction <maximumf>, %110, %cst_33 [1] : vector<8x8xf32> to vector<8xf32>
    %112 = vector.shape_cast %111 : vector<8xf32> to vector<8x1xf32>
    %113 = vector.broadcast %112 : vector<8x1xf32> to vector<8x8xf32>
    %114 = arith.subf %110, %113 : vector<8x8xf32>
    %115 = math.exp %114 : vector<8x8xf32>
    %cst_34 = arith.constant dense<0.000000e+00> : vector<8xf32>
    %116 = vector.multi_reduction <add>, %115, %cst_34 [1] : vector<8x8xf32> to vector<8xf32>
    %117 = vector.shape_cast %116 : vector<8xf32> to vector<8x1xf32>
    %118 = tpu.reciprocal %117 {approx = true} : vector<8x1xf32> -> vector<8x1xf32>
    %119 = vector.broadcast %118 : vector<8x1xf32> to vector<8x8xf32>
    %120 = arith.mulf %115, %119 : vector<8x8xf32>
    %121 = arith.truncf %120 : vector<8x8xf32> to vector<8x8xbf16>
    %122 = arith.truncf %106 : vector<8x8xf32> to vector<8x8xbf16>
    %cst_35 = arith.constant dense<0.000000e+00> : vector<8x8xf32>
    %123 = tpu.matmul %121, %122, %cst_35 {dimension_numbers = #tpu.dot_dimension_numbers<[1], [0], [0], [1], [0, 0, 1, 1], [], []>} : vector<8x8xbf16>, vector<8x8xbf16>, vector<8x8xf32> -> vector<8x8xf32>
    %c0_36 = arith.constant 0 : index
    %c24 = arith.constant 24 : index
    %124 = vector.load %arg10[%c0_36, %c24] : memref<8x32xf32, #tpu.memory_space<vmem>>, vector<8x8xf32>
    tpu.vector_store %arg10[%c0_36, %c24], %123 {strides = array<i32>} : memref<8x32xf32, #tpu.memory_space<vmem>>, vector<8x8xf32>,
    %c0_37 = arith.constant 0 : index
    %c0_38 = arith.constant 0 : index
    %125 = vector.load %arg10[%c0_37, %c0_38] : memref<8x32xf32, #tpu.memory_space<vmem>>, vector<8x32xf32>
    %126 = arith.truncf %125 : vector<8x32xf32> to vector<8x32xbf16>
    %c0_39 = arith.constant 0 : index
    %c0_40 = arith.constant 0 : index
    %c0_41 = arith.constant 0 : index
    %127 = vector.load %arg4[%c0_39, %c0_40, %c0_41] : memref<1x32x32xbf16, #tpu.memory_space<vmem>>, vector<1x32x32xbf16>
    %128 = vector.shape_cast %127 : vector<1x32x32xbf16> to vector<32x32xbf16>
    %cst_42 = arith.constant dense<0.000000e+00> : vector<8x32xf32>
    %129 = tpu.matmul %126, %128, %cst_42 {dimension_numbers = #tpu.dot_dimension_numbers<[1], [0], [0], [1], [0, 0, 1, 1], [], []>} : vector<8x32xbf16>, vector<32x32xbf16>, vector<8x32xf32> -> vector<8x32xf32>
    %130 = vector.broadcast %8 : vector<1x32xf32> to vector<8x32xf32>
    %131 = arith.addf %129, %130 : vector<8x32xf32>
    %132 = arith.addf %4, %131 : vector<8x32xf32>
    %cst_43 = arith.constant dense<0.000000e+00> : vector<8xf32>
    %133 = vector.multi_reduction <add>, %132, %cst_43 [1] : vector<8x32xf32> to vector<8xf32>
    %134 = vector.shape_cast %133 : vector<8xf32> to vector<8x1xf32>
    %cst_44 = arith.constant 3.200000e+01 : f32
    %135 = vector.broadcast %cst_44 : f32 to vector<8x1xf32>
    %136 = arith.divf %134, %135 : vector<8x1xf32>
    %137 = vector.broadcast %136 : vector<8x1xf32> to vector<8x32xf32>
    %138 = arith.subf %132, %137 : vector<8x32xf32>
    %139 = arith.mulf %138, %138 : vector<8x32xf32>
    %cst_45 = arith.constant dense<0.000000e+00> : vector<8xf32>
    %140 = vector.multi_reduction <add>, %139, %cst_45 [1] : vector<8x32xf32> to vector<8xf32>
    %141 = vector.shape_cast %140 : vector<8xf32> to vector<8x1xf32>
    %cst_46 = arith.constant 3.200000e+01 : f32
    %142 = vector.broadcast %cst_46 : f32 to vector<8x1xf32>
    %143 = arith.divf %141, %142 : vector<8x1xf32>
    %144 = vector.broadcast %136 : vector<8x1xf32> to vector<8x32xf32>
    %145 = arith.subf %132, %144 : vector<8x32xf32>
    %cst_47 = arith.constant 9.99999974E-6 : f32
    %146 = vector.broadcast %cst_47 : f32 to vector<8x1xf32>
    %147 = arith.addf %143, %146 : vector<8x1xf32>
    %148 = math.rsqrt %147 : vector<8x1xf32>
    %149 = vector.broadcast %148 : vector<8x1xf32> to vector<8x32xf32>
    %150 = arith.mulf %145, %149 : vector<8x32xf32>
    %151 = arith.truncf %150 : vector<8x32xf32> to vector<8x32xbf16>
    %c0_48 = arith.constant 0 : index
    %c0_49 = arith.constant 0 : index
    %c0_50 = arith.constant 0 : index
    %152 = vector.load %arg5[%c0_48, %c0_49, %c0_50] : memref<1x32x128xbf16, #tpu.memory_space<vmem>>, vector<1x32x128xbf16>
    %153 = vector.shape_cast %152 : vector<1x32x128xbf16> to vector<32x128xbf16>
    %cst_51 = arith.constant dense<0.000000e+00> : vector<8x128xf32>
    %154 = tpu.matmul %151, %153, %cst_51 {dimension_numbers = #tpu.dot_dimension_numbers<[1], [0], [0], [1], [0, 0, 1, 1], [], []>} : vector<8x32xbf16>, vector<32x128xbf16>, vector<8x128xf32> -> vector<8x128xf32>
    %155 = vector.broadcast %9 : vector<1x128xf32> to vector<8x128xf32>
    %156 = arith.addf %154, %155 : vector<8x128xf32>
    %cst_52 = arith.constant 1.702000e+00 : f32
    %157 = vector.broadcast %cst_52 : f32 to vector<8x128xf32>
    %158 = arith.mulf %157, %156 : vector<8x128xf32>
    %159 = arith.negf %158 : vector<8x128xf32>
    %160 = math.exp %159 : vector<8x128xf32>
    %cst_53 = arith.constant 1.000000e+00 : f32
    %161 = vector.broadcast %cst_53 : f32 to vector<8x128xf32>
    %162 = arith.addf %161, %160 : vector<8x128xf32>
    %163 = arith.divf %161, %162 : vector<8x128xf32>
    %164 = arith.mulf %156, %163 : vector<8x128xf32>
    %165 = arith.truncf %164 : vector<8x128xf32> to vector<8x128xbf16>
    %c0_54 = arith.constant 0 : index
    %c0_55 = arith.constant 0 : index
    %c0_56 = arith.constant 0 : index
    %166 = vector.load %arg6[%c0_54, %c0_55, %c0_56] : memref<1x128x32xbf16, #tpu.memory_space<vmem>>, vector<1x128x32xbf16>
    %167 = vector.shape_cast %166 : vector<1x128x32xbf16> to vector<128x32xbf16>
    %cst_57 = arith.constant dense<0.000000e+00> : vector<8x32xf32>
    %168 = tpu.matmul %165, %167, %cst_57 {dimension_numbers = #tpu.dot_dimension_numbers<[1], [0], [0], [1], [0, 0, 1, 1], [], []>} : vector<8x128xbf16>, vector<128x32xbf16>, vector<8x32xf32> -> vector<8x32xf32>
    %169 = vector.broadcast %10 : vector<1x32xf32> to vector<8x32xf32>
    %170 = arith.addf %168, %169 : vector<8x32xf32>
    %171 = arith.addf %132, %170 : vector<8x32xf32>
    %c0_58 = arith.constant 0 : index
    %c0_59 = arith.constant 0 : index
    %172 = vector.load %arg8[%c0_58, %c0_59] : memref<2x32xf32, #tpu.memory_space<vmem>>, vector<2x32xf32>
    %c1_i32 = arith.constant 1 : i32
    %173 = arith.cmpi eq, %arg1, %c1_i32 : i32
    %174 = arith.extui %173 : i1 to i32
    %c0_i32_60 = arith.constant 0 : i32
    %175 = arith.cmpi ne, %174, %c0_i32_60 : i32
    scf.if %175 {
      %cst_63 = arith.constant dense<0.000000e+00> : vector<8xf32>
      %179 = vector.multi_reduction <add>, %171, %cst_63 [1] : vector<8x32xf32> to vector<8xf32>
      %180 = vector.shape_cast %179 : vector<8xf32> to vector<8x1xf32>
      %cst_64 = arith.constant 3.200000e+01 : f32
      %181 = vector.broadcast %cst_64 : f32 to vector<8x1xf32>
      %182 = arith.divf %180, %181 : vector<8x1xf32>
      %183 = vector.broadcast %182 : vector<8x1xf32> to vector<8x32xf32>
      %184 = arith.subf %171, %183 : vector<8x32xf32>
      %185 = arith.mulf %184, %184 : vector<8x32xf32>
      %cst_65 = arith.constant dense<0.000000e+00> : vector<8xf32>
      %186 = vector.multi_reduction <add>, %185, %cst_65 [1] : vector<8x32xf32> to vector<8xf32>
      %187 = vector.shape_cast %186 : vector<8xf32> to vector<8x1xf32>
      %cst_66 = arith.constant 3.200000e+01 : f32
      %188 = vector.broadcast %cst_66 : f32 to vector<8x1xf32>
      %189 = arith.divf %187, %188 : vector<8x1xf32>
      %190 = vector.broadcast %182 : vector<8x1xf32> to vector<8x32xf32>
      %191 = arith.subf %171, %190 : vector<8x32xf32>
      %cst_67 = arith.constant 9.99999974E-6 : f32
      %192 = vector.broadcast %cst_67 : f32 to vector<8x1xf32>
      %193 = arith.addf %189, %192 : vector<8x1xf32>
      %194 = math.rsqrt %193 : vector<8x1xf32>
      %195 = vector.broadcast %194 : vector<8x1xf32> to vector<8x32xf32>
      %196 = arith.mulf %191, %195 : vector<8x32xf32>
      %197 = vector.extract_strided_slice %172 {offsets = [0, 0], sizes = [1, 32], strides = [1, 1]} : vector<2x32xf32> to vector<1x32xf32>
      %198 = vector.broadcast %197 : vector<1x32xf32> to vector<8x32xf32>
      %199 = arith.mulf %196, %198 : vector<8x32xf32>
      %200 = vector.extract_strided_slice %172 {offsets = [1, 0], sizes = [1, 32], strides = [1, 1]} : vector<2x32xf32> to vector<1x32xf32>
      %201 = vector.broadcast %200 : vector<1x32xf32> to vector<8x32xf32>
      %202 = arith.addf %199, %201 : vector<8x32xf32>
      %c0_68 = arith.constant 0 : index
      %c0_69 = arith.constant 0 : index
      %c0_70 = arith.constant 0 : index
      %203 = vector.load %arg9[%c0_68, %c0_69, %c0_70] : memref<1x8x32xf32, #tpu.memory_space<vmem>>, vector<1x8x32xf32>
      %204 = vector.shape_cast %203 : vector<1x8x32xf32> to vector<8x32xf32>
      %205 = vector.shape_cast %202 : vector<8x32xf32> to vector<1x8x32xf32>
      tpu.vector_store %arg9[%c0_68, %c0_69, %c0_70], %205 {strides = array<i32>} : memref<1x8x32xf32, #tpu.memory_space<vmem>>, vector<1x8x32xf32>,
    } else {
    }
    %c1_i32_61 = arith.constant 1 : i32
    %176 = arith.cmpi ne, %arg1, %c1_i32_61 : i32
    %177 = arith.extui %176 : i1 to i32
    %c0_i32_62 = arith.constant 0 : i32
    %178 = arith.cmpi ne, %177, %c0_i32_62 : i32
    scf.if %178 {
      %c0_63 = arith.constant 0 : index
      %c0_64 = arith.constant 0 : index
      %c0_65 = arith.constant 0 : index
      %179 = vector.load %arg9[%c0_63, %c0_64, %c0_65] : memref<1x8x32xf32, #tpu.memory_space<vmem>>, vector<1x8x32xf32>
      %180 = vector.shape_cast %179 : vector<1x8x32xf32> to vector<8x32xf32>
      %181 = vector.shape_cast %171 : vector<8x32xf32> to vector<1x8x32xf32>
      tpu.vector_store %arg9[%c0_63, %c0_64, %c0_65], %181 {strides = array<i32>} : memref<1x8x32xf32, #tpu.memory_space<vmem>>, vector<1x8x32xf32>,
    } else {
    }
    return
  }
  func.func @transform_0(%arg0: i32, %arg1: i32) -> (i32, i32, i32) {
    %c0_i32 = arith.constant 0 : i32
    %c0_i32_0 = arith.constant 0 : i32
    %c0_i32_1 = arith.constant 0 : i32
    return %arg0, %c0_i32, %c0_i32_0 : i32, i32, i32
  }
  func.func @transform_1(%arg0: i32, %arg1: i32) -> (i32, i32, i32) {
    %c0_i32 = arith.constant 0 : i32
    %c0_i32_0 = arith.constant 0 : i32
    %c0_i32_1 = arith.constant 0 : i32
    return %arg1, %c0_i32, %c0_i32_0 : i32, i32, i32
  }
  func.func @transform_2(%arg0: i32, %arg1: i32) -> (i32, i32, i32) {
    %c0_i32 = arith.constant 0 : i32
    %c0_i32_0 = arith.constant 0 : i32
    %c0_i32_1 = arith.constant 0 : i32
    return %arg1, %c0_i32, %c0_i32_0 : i32, i32, i32
  }
  func.func @transform_3(%arg0: i32, %arg1: i32) -> (i32, i32, i32) {
    %c0_i32 = arith.constant 0 : i32
    %c0_i32_0 = arith.constant 0 : i32
    %c0_i32_1 = arith.constant 0 : i32
    return %arg1, %c0_i32, %c0_i32_0 : i32, i32, i32
  }
  func.func @transform_4(%arg0: i32, %arg1: i32) -> (i32, i32, i32) {
    %c0_i32 = arith.constant 0 : i32
    %c0_i32_0 = arith.constant 0 : i32
    %c0_i32_1 = arith.constant 0 : i32
    return %arg1, %c0_i32, %c0_i32_0 : i32, i32, i32
  }
  func.func @transform_5(%arg0: i32, %arg1: i32) -> (i32, i32, i32) {
    %c0_i32 = arith.constant 0 : i32
    %c0_i32_0 = arith.constant 0 : i32
    %c0_i32_1 = arith.constant 0 : i32
    return %arg1, %c0_i32, %c0_i32_0 : i32, i32, i32
  }
  func.func @transform_6(%arg0: i32, %arg1: i32) -> (i32, i32) {
    %c0_i32 = arith.constant 0 : i32
    %c0_i32_0 = arith.constant 0 : i32
    %c0_i32_1 = arith.constant 0 : i32
    return %c0_i32, %c0_i32_0 : i32, i32
  }
  func.func @transform_7(%arg0: i32, %arg1: i32) -> (i32, i32, i32) {
    %c0_i32 = arith.constant 0 : i32
    %c0_i32_0 = arith.constant 0 : i32
    %c0_i32_1 = arith.constant 0 : i32
    return %arg0, %c0_i32, %c0_i32_0 : i32, i32, i32
  }
}

</mosaic_0001>

<llo_original>
// kernel: clip_text_embedder.1
$region0: #{clip_text_embedder.1}
  #allocation0 [shape = 'u32[]', space=smem, size = 0x4, offset = 0x4, fixed_abs, tag = 'smem constant byte address 0x4 - core index']
  #allocation1 [shape = 'u32[144,128]{1,0:T(1,128)}', space=vmem, size = 0x12000, scoped, tag = 'internal scratch']
  #allocation2 [shape = 'f32[8,32]{1,0:T(8,128)}', space=vmem, size = 0x1000, scoped, tag = 'scratch operand']
  %s0 = inlined_call_operand.vmem [shape: f32[2,8,32], index: 0, kind: input, shape index: {}]
  %s1 = inlined_call_operand.vmem [shape: bf16[2,32,96], index: 1, kind: input, shape index: {}]
  %s2 = inlined_call_operand.vmem [shape: bf16[2,32,32], index: 2, kind: input, shape index: {}]
  %s3 = inlined_call_operand.vmem [shape: bf16[2,32,128], index: 3, kind: input, shape index: {}]
  %s4 = inlined_call_operand.vmem [shape: bf16[2,128,32], index: 4, kind: input, shape index: {}]
  %s5 = inlined_call_operand.vmem [shape: f32[2,8,128], index: 5, kind: input, shape index: {}]
  %s6 = inlined_call_operand.vmem [shape: f32[2,32], index: 6, kind: input, shape index: {}]
  %s7 = inlined_call_operand.hbm [shape: f32[2,8,32], index: 7, kind: output, shape index: {}]
  %s8 = sld [smem:[#allocation0]]
  $region73: #{clip_text_embedder.1} parent=0
    _
  %s10 = ssub.s32 1, %s8
  %s11 = scalar_select 0, %s10, %s8
  $region1: #{clip_text_embedder.1} parent=0
    #allocation3 [shape = 'u8[8192]{0}', space=vmem, size = 0x2000, scoped, tag = 'output window, operand 0']
    #allocation4 [shape = 's32[2]{0}', space=sflag, size = 0x8, scoped, tag = 'scoped memory for clip_text_embedder.1']
    %12 = vsyncpa [#allocation4], 0
    %s13 = scalar_lea.sflag [#allocation4], 1
    %14 = vsyncpa %s13, 0
    loop: start=0, step=1, limit=6
    $region2: #{clip_text_embedder.1} parent=1 // loop_pre_header
      _
    $region3: #{clip_text_embedder.1} parent=1 // loop_header
      %s16 = sphi 0, %s20
      %p17 = scmp.ge.s32.totalorder %s16, 6
      %s23 = sphi 0, %s35
      %s24 = sphi 0, %s31
      %s25 = sphi 0, %s23
      %s26 = sphi 0, %s24
      %s27 = sphi 0, %s25
      %s28 = sphi 0, %s26
      %s38 = sphi 0, %s40
      %s41 = sphi 0, %s38
      %s42 = sphi 0, %s41
      %s58 = sphi 0, %s42
      %s64 = sphi 0, %s66
      %s67 = sphi 0, %s64
      %s68 = sphi 0, %s67
      %s84 = sphi 0, %s68
      %s90 = sphi 0, %s92
      %s93 = sphi 0, %s90
      %s94 = sphi 0, %s93
      %s110 = sphi 0, %s94
      %s116 = sphi 0, %s118
      %s119 = sphi 0, %s116
      %s120 = sphi 0, %s119
      %s136 = sphi 0, %s120
      %s142 = sphi 0, %s144
      %s145 = sphi 0, %s142
      %s146 = sphi 0, %s145
      %s162 = sphi 0, %s146
      %s168 = sphi 0, %s170
      %s171 = sphi 0, %s168
      %s172 = sphi 0, %s171
      %s188 = sphi 0, %s172
      %s192 = sphi 0, %s192
      %s194 = sphi 0, %s192
      %s195 = sphi 0, %s194
      %s209 = sphi 0, %s195
      %s215 = sphi 0, %s217
      %s218 = sphi 0, %s215
      %s219 = sphi 0, %s218
      %s235 = sphi 0, %s219
    $region4: #{clip_text_embedder.1} parent=1 // loop_header_branch
      %19 = sbr.rel (%p17) target = $region8
    $region5: #{clip_text_embedder.1} parent=1 // loop_body
      %s21 = ssub.s32 %s16, 1
      %s22 = ssub.s32 %s16, 2
      %s29 = sadd.s32 1, %s24
      %p30 = scmp.ge.s32.totalorder %s29, 2
      %s31 = scalar_select %p30, 0, %s29
      %s32 = sadd.s32 1, %s23
      %s33 = scalar_select %p30, %s32, %s23
      %p34 = scmp.ge.s32.totalorder %s33, 2
      %s35 = scalar_select %p34, 0, %s33
      %s36 = ssub.s32 %s23, %s35
      %p37 = scmp.eq.s32.totalorder %s36, 0
      %s39 = sadd.s32 %s38, 1
      %s40 = scalar_select %p37, %s38, %s39
      %p43 = pneg %p37
      %p44 = scmp.eq.s32.totalorder %s16, 3
      %p45 = por %p43, %p44
      %p46 = scmp.ne.s32.totalorder %s38, %s41
      %p47 = scmp.eq.s32.totalorder %s16, 0
      %p48 = por %p46, %p47
      %p49 = scmp.ne.s32.totalorder %s38, %s41
      %p50 = scmp.eq.s32.totalorder %s21, 3
      %p51 = por %p49, %p50
      %p52 = scmp.ne.s32.totalorder %s41, %s42
      %p53 = scmp.eq.s32.totalorder %s21, 0
      %p54 = por %p52, %p53
      %p55 = scmp.ne.s32.totalorder %s41, %s42
      %p56 = scmp.eq.s32.totalorder %s22, 3
      %p57 = por %p55, %p56
      %p59 = scmp.ne.s32.totalorder %s42, %s58
      %p60 = scmp.eq.s32.totalorder %s22, 0
      %p61 = por %p59, %p60
      %s62 = ssub.s32 %s24, %s31
      %p63 = scmp.eq.s32.totalorder %s62, 0
      %s65 = sadd.s32 %s64, 1
      %s66 = scalar_select %p63, %s64, %s65
      %p69 = pneg %p63
      %p70 = scmp.eq.s32.totalorder %s16, 3
      %p71 = por %p69, %p70
      %p72 = scmp.ne.s32.totalorder %s64, %s67
      %p73 = scmp.eq.s32.totalorder %s16, 0
      %p74 = por %p72, %p73
      %p75 = scmp.ne.s32.totalorder %s64, %s67
      %p76 = scmp.eq.s32.totalorder %s21, 3
      %p77 = por %p75, %p76
      %p78 = scmp.ne.s32.totalorder %s67, %s68
      %p79 = scmp.eq.s32.totalorder %s21, 0
      %p80 = por %p78, %p79
      %p81 = scmp.ne.s32.totalorder %s67, %s68
      %p82 = scmp.eq.s32.totalorder %s22, 3
      %p83 = por %p81, %p82
      %p85 = scmp.ne.s32.totalorder %s68, %s84
      %p86 = scmp.eq.s32.totalorder %s22, 0
      %p87 = por %p85, %p86
      %s88 = ssub.s32 %s24, %s31
      %p89 = scmp.eq.s32.totalorder %s88, 0
      %s91 = sadd.s32 %s90, 1
      %s92 = scalar_select %p89, %s90, %s91
      %p95 = pneg %p89
      %p96 = scmp.eq.s32.totalorder %s16, 3
      %p97 = por %p95, %p96
      %p98 = scmp.ne.s32.totalorder %s90, %s93
      %p99 = scmp.eq.s32.totalorder %s16, 0
      %p100 = por %p98, %p99
      %p101 = scmp.ne.s32.totalorder %s90, %s93
      %p102 = scmp.eq.s32.totalorder %s21, 3
      %p103 = por %p101, %p102
      %p104 = scmp.ne.s32.totalorder %s93, %s94
      %p105 = scmp.eq.s32.totalorder %s21, 0
      %p106 = por %p104, %p105
      %p107 = scmp.ne.s32.totalorder %s93, %s94
      %p108 = scmp.eq.s32.totalorder %s22, 3
      %p109 = por %p107, %p108
      %p111 = scmp.ne.s32.totalorder %s94, %s110
      %p112 = scmp.eq.s32.totalorder %s22, 0
      %p113 = por %p111, %p112
      %s114 = ssub.s32 %s24, %s31
      %p115 = scmp.eq.s32.totalorder %s114, 0
      %s117 = sadd.s32 %s116, 1
      %s118 = scalar_select %p115, %s116, %s117
      %p121 = pneg %p115
      %p122 = scmp.eq.s32.totalorder %s16, 3
      %p123 = por %p121, %p122
      %p124 = scmp.ne.s32.totalorder %s116, %s119
      %p125 = scmp.eq.s32.totalorder %s16, 0
      %p126 = por %p124, %p125
      %p127 = scmp.ne.s32.totalorder %s116, %s119
      %p128 = scmp.eq.s32.totalorder %s21, 3
      %p129 = por %p127, %p128
      %p130 = scmp.ne.s32.totalorder %s119, %s120
      %p131 = scmp.eq.s32.totalorder %s21, 0
      %p132 = por %p130, %p131
      %p133 = scmp.ne.s32.totalorder %s119, %s120
      %p134 = scmp.eq.s32.totalorder %s22, 3
      %p135 = por %p133, %p134
      %p137 = scmp.ne.s32.totalorder %s120, %s136
      %p138 = scmp.eq.s32.totalorder %s22, 0
      %p139 = por %p137, %p138
      %s140 = ssub.s32 %s24, %s31
      %p141 = scmp.eq.s32.totalorder %s140, 0
      %s143 = sadd.s32 %s142, 1
      %s144 = scalar_select %p141, %s142, %s143
      %p147 = pneg %p141
      %p148 = scmp.eq.s32.totalorder %s16, 3
      %p149 = por %p147, %p148
      %p150 = scmp.ne.s32.totalorder %s142, %s145
      %p151 = scmp.eq.s32.totalorder %s16, 0
      %p152 = por %p150, %p151
      %p153 = scmp.ne.s32.totalorder %s142, %s145
      %p154 = scmp.eq.s32.totalorder %s21, 3
      %p155 = por %p153, %p154
      %p156 = scmp.ne.s32.totalorder %s145, %s146
      %p157 = scmp.eq.s32.totalorder %s21, 0
      %p158 = por %p156, %p157
      %p159 = scmp.ne.s32.totalorder %s145, %s146
      %p160 = scmp.eq.s32.totalorder %s22, 3
      %p161 = por %p159, %p160
      %p163 = scmp.ne.s32.totalorder %s146, %s162
      %p164 = scmp.eq.s32.totalorder %s22, 0
      %p165 = por %p163, %p164
      %s166 = ssub.s32 %s24, %s31
      %p167 = scmp.eq.s32.totalorder %s166, 0
      %s169 = sadd.s32 %s168, 1
      %s170 = scalar_select %p167, %s168, %s169
      %p173 = pneg %p167
      %p174 = scmp.eq.s32.totalorder %s16, 3
      %p175 = por %p173, %p174
      %p176 = scmp.ne.s32.totalorder %s168, %s171
      %p177 = scmp.eq.s32.totalorder %s16, 0
      %p178 = por %p176, %p177
      %p179 = scmp.ne.s32.totalorder %s168, %s171
      %p180 = scmp.eq.s32.totalorder %s21, 3
      %p181 = por %p179, %p180
      %p182 = scmp.ne.s32.totalorder %s171, %s172
      %p183 = scmp.eq.s32.totalorder %s21, 0
      %p184 = por %p182, %p183
      %p185 = scmp.ne.s32.totalorder %s171, %s172
      %p186 = scmp.eq.s32.totalorder %s22, 3
      %p187 = por %p185, %p186
      %p189 = scmp.ne.s32.totalorder %s172, %s188
      %p190 = scmp.eq.s32.totalorder %s22, 0
      %p191 = por %p189, %p190
      %s193 = sadd.s32 %s192, 1
      %p196 = scmp.eq.s32.totalorder %s16, 3
      %p197 = scmp.ne.s32.totalorder %s192, %s194
      %p198 = scmp.eq.s32.totalorder %s16, 0
      %p199 = por %p197, %p198
      %p200 = scmp.ne.s32.totalorder %s192, %s194
      %p201 = scmp.eq.s32.totalorder %s21, 3
      %p202 = por %p200, %p201
      %p203 = scmp.ne.s32.totalorder %s194, %s195
      %p204 = scmp.eq.s32.totalorder %s21, 0
      %p205 = por %p203, %p204
      %p206 = scmp.ne.s32.totalorder %s194, %s195
      %p207 = scmp.eq.s32.totalorder %s22, 3
      %p208 = por %p206, %p207
      %p210 = scmp.ne.s32.totalorder %s195, %s209
      %p211 = scmp.eq.s32.totalorder %s22, 0
      %p212 = por %p210, %p211
      %s213 = ssub.s32 %s23, %s35
      %p214 = scmp.eq.s32.totalorder %s213, 0
      %s216 = sadd.s32 %s215, 1
      %s217 = scalar_select %p214, %s215, %s216
      %p220 = pneg %p214
      %p221 = scmp.eq.s32.totalorder %s16, 3
      %p222 = por %p220, %p221
      %p223 = scmp.ne.s32.totalorder %s215, %s218
      %p224 = scmp.eq.s32.totalorder %s16, 0
      %p225 = por %p223, %p224
      %p226 = scmp.ne.s32.totalorder %s215, %s218
      %p227 = scmp.eq.s32.totalorder %s21, 3
      %p228 = por %p226, %p227
      %p229 = scmp.ne.s32.totalorder %s218, %s219
      %p230 = scmp.eq.s32.totalorder %s21, 0
      %p231 = por %p229, %p230
      %p232 = scmp.ne.s32.totalorder %s218, %s219
      %p233 = scmp.eq.s32.totalorder %s22, 3
      %p234 = por %p232, %p233
      %p236 = scmp.ne.s32.totalorder %s219, %s235
      %p237 = scmp.eq.s32.totalorder %s22, 0
      %p238 = por %p236, %p237
      %p239 = scmp.le.s32.totalorder 1, %s16
      %p240 = scmp.lt.s32.totalorder %s16, 5
      %p241 = pnand %p239, %p240
      %p242 = pneg %p241
      // Predicated region
      $region9: #{clip_text_embedder.1} parent=5 // pred_check
        _
      $region10: #{clip_text_embedder.1} parent=5 // pred_check_branch
        %244 = sbr.rel (%p241) target = $region12
      $region11: #{clip_text_embedder.1} parent=5 // pred_region
        %s245 = ssub.s32 %s16, 1
        // Predicated region
        $region13: #{clip_text_embedder.1} parent=11 // pred_check
          %p246 = pneg %p205
        $region14: #{clip_text_embedder.1} parent=11 // pred_check_branch
          %248 = sbr.rel (%p246) target = $region16
        $region15: #{clip_text_embedder.1} parent=11 // pred_region
          _
        $region16: #{clip_text_embedder.1} parent=11 // pred_fallthru
          _
      $region12: #{clip_text_embedder.1} parent=5 // pred_fallthru
        _
      %p249 = scmp.lt.s32.totalorder %s16, 4
      // Predicated region
      $region17: #{clip_text_embedder.1} parent=5 // pred_check
        %p250 = pneg %p249
      $region18: #{clip_text_embedder.1} parent=5 // pred_check_branch
        %252 = sbr.rel (%p250) target = $region20
      $region19: #{clip_text_embedder.1} parent=5 // pred_region
        // Predicated region
        $region21: #{clip_text_embedder.1} parent=19 // pred_check
          %p253 = pneg %p48
        $region22: #{clip_text_embedder.1} parent=19 // pred_check_branch
          %255 = sbr.rel (%p253) target = $region24
        $region23: #{clip_text_embedder.1} parent=19 // pred_region
          %p256 = scmp.lt.s32.totalorder %s23, 1
          %s257 = scalar_select %p256, %s23, 1
          %s258 = smul.addr %s257, 8
          %s259 = scalar_lea.vmem %s0, %s258
        $region24: #{clip_text_embedder.1} parent=19 // pred_fallthru
          _
        // Predicated region
        $region25: #{clip_text_embedder.1} parent=19 // pred_check
          %p260 = pneg %p74
        $region26: #{clip_text_embedder.1} parent=19 // pred_check_branch
          %262 = sbr.rel (%p260) target = $region28
        $region27: #{clip_text_embedder.1} parent=19 // pred_region
          %p263 = scmp.lt.s32.totalorder %s24, 1
          %s264 = scalar_select %p263, %s24, 1
          %s265 = smul.addr %s264, 4
          %s266 = smul.addr %s265, 4
          %s267 = scalar_lea.vmem %s1, %s266
        $region28: #{clip_text_embedder.1} parent=19 // pred_fallthru
          _
        // Predicated region
        $region29: #{clip_text_embedder.1} parent=19 // pred_check
          %p268 = pneg %p100
        $region30: #{clip_text_embedder.1} parent=19 // pred_check_branch
          %270 = sbr.rel (%p268) target = $region32
        $region31: #{clip_text_embedder.1} parent=19 // pred_region
          %p271 = scmp.lt.s32.totalorder %s24, 1
          %s272 = scalar_select %p271, %s24, 1
          %s273 = smul.addr %s272, 4
          %s274 = smul.addr %s273, 4
          %s275 = scalar_lea.vmem %s2, %s274
        $region32: #{clip_text_embedder.1} parent=19 // pred_fallthru
          _
        // Predicated region
        $region33: #{clip_text_embedder.1} parent=19 // pred_check
          %p276 = pneg %p126
        $region34: #{clip_text_embedder.1} parent=19 // pred_check_branch
          %278 = sbr.rel (%p276) target = $region36
        $region35: #{clip_text_embedder.1} parent=19 // pred_region
          %p279 = scmp.lt.s32.totalorder %s24, 1
          %s280 = scalar_select %p279, %s24, 1
          %s281 = smul.addr %s280, 4
          %s282 = smul.addr %s281, 4
          %s283 = scalar_lea.vmem %s3, %s282
        $region36: #{clip_text_embedder.1} parent=19 // pred_fallthru
          _
        // Predicated region
        $region37: #{clip_text_embedder.1} parent=19 // pred_check
          %p284 = pneg %p152
        $region38: #{clip_text_embedder.1} parent=19 // pred_check_branch
          %286 = sbr.rel (%p284) target = $region40
        $region39: #{clip_text_embedder.1} parent=19 // pred_region
          %p287 = scmp.lt.s32.totalorder %s24, 1
          %s288 = scalar_select %p287, %s24, 1
          %s289 = smul.addr %s288, 16
          %s290 = smul.addr %s289, 4
          %s291 = scalar_lea.vmem %s4, %s290
        $region40: #{clip_text_embedder.1} parent=19 // pred_fallthru
          _
        // Predicated region
        $region41: #{clip_text_embedder.1} parent=19 // pred_check
          %p292 = pneg %p178
        $region42: #{clip_text_embedder.1} parent=19 // pred_check_branch
          %294 = sbr.rel (%p292) target = $region44
        $region43: #{clip_text_embedder.1} parent=19 // pred_region
          %p295 = scmp.lt.s32.totalorder %s24, 1
          %s296 = scalar_select %p295, %s24, 1
          %s297 = smul.addr %s296, 8
          %s298 = scalar_lea.vmem %s5, %s297
        $region44: #{clip_text_embedder.1} parent=19 // pred_fallthru
          _
      $region20: #{clip_text_embedder.1} parent=5 // pred_fallthru
        _
      %p299 = scmp.le.s32.totalorder 1, %s16
      %p300 = scmp.lt.s32.totalorder %s16, 5
      %p301 = pnand %p299, %p300
      %p302 = pneg %p301
      // Predicated region
      $region45: #{clip_text_embedder.1} parent=5 // pred_check
        _
      $region46: #{clip_text_embedder.1} parent=5 // pred_check_branch
        %304 = sbr.rel (%p301) target = $region48
      $region47: #{clip_text_embedder.1} parent=5 // pred_region
        %s305 = ssub.s32 %s16, 1
        %p306 = scmp.lt.s32.totalorder %s25, 1
        %s307 = scalar_select %p306, %s25, 1
        %s308 = smul.addr %s307, 8
        %s309 = scalar_lea.vmem %s0, %s308
        %p310 = pneg %p54
        %p311 = pneg %p51
        %p312 = scmp.lt.s32.totalorder %s26, 1
        %s313 = scalar_select %p312, %s26, 1
        %s314 = smul.addr %s313, 4
        %s315 = smul.addr %s314, 4
        %s316 = scalar_lea.vmem %s1, %s315
        %p317 = pneg %p80
        %p318 = pneg %p77
        %p319 = scmp.lt.s32.totalorder %s26, 1
        %s320 = scalar_select %p319, %s26, 1
        %s321 = smul.addr %s320, 4
        %s322 = smul.addr %s321, 4
        %s323 = scalar_lea.vmem %s2, %s322
        %p324 = pneg %p106
        %p325 = pneg %p103
        %p326 = scmp.lt.s32.totalorder %s26, 1
        %s327 = scalar_select %p326, %s26, 1
        %s328 = smul.addr %s327, 4
        %s329 = smul.addr %s328, 4
        %s330 = scalar_lea.vmem %s3, %s329
        %p331 = pneg %p132
        %p332 = pneg %p129
        %p333 = scmp.lt.s32.totalorder %s26, 1
        %s334 = scalar_select %p333, %s26, 1
        %s335 = smul.addr %s334, 16
        %s336 = smul.addr %s335, 4
        %s337 = scalar_lea.vmem %s4, %s336
        %p338 = pneg %p158
        %p339 = pneg %p155
        %p340 = scmp.lt.s32.totalorder %s26, 1
        %s341 = scalar_select %p340, %s26, 1
        %s342 = smul.addr %s341, 8
        %s343 = scalar_lea.vmem %s5, %s342
        %p344 = pneg %p184
        %p345 = pneg %p181
        %p346 = pneg %p205
        %p347 = pneg %p202
        %p348 = pneg %p231
        %p349 = pneg %p228
        %s350 = sand.u32 %s218, 1
        %s351 = scalar_lea.sflag [#allocation4], %s350
        %s352 = sand.u32 %s218, 1
        %s353 = smul.addr %s352, 8
        %s354 = scalar_lea.vmem [#allocation3], %s353
        %p355 = scmp.lt.s32.totalorder %s25, 1
        %s356 = scalar_select %p355, %s25, 1
        %s357 = smul.addr %s356, 8
        %s358 = scalar_lea.vmem %s0, %s357
        %p359 = scmp.lt.s32.totalorder %s26, 1
        %s360 = scalar_select %p359, %s26, 1
        %s361 = smul.addr %s360, 4
        %s362 = smul.addr %s361, 4
        %s363 = scalar_lea.vmem %s1, %s362
        %p364 = scmp.lt.s32.totalorder %s26, 1
        %s365 = scalar_select %p364, %s26, 1
        %s366 = smul.addr %s365, 4
        %s367 = smul.addr %s366, 4
        %s368 = scalar_lea.vmem %s2, %s367
        %p369 = scmp.lt.s32.totalorder %s26, 1
        %s370 = scalar_select %p369, %s26, 1
        %s371 = smul.addr %s370, 4
        %s372 = smul.addr %s371, 4
        %s373 = scalar_lea.vmem %s3, %s372
        %p374 = scmp.lt.s32.totalorder %s26, 1
        %s375 = scalar_select %p374, %s26, 1
        %s376 = smul.addr %s375, 16
        %s377 = smul.addr %s376, 4
        %s378 = scalar_lea.vmem %s4, %s377
        %p379 = scmp.lt.s32.totalorder %s26, 1
        %s380 = scalar_select %p379, %s26, 1
        %s381 = smul.addr %s380, 8
        %s382 = scalar_lea.vmem %s5, %s381
        %p384 = scmp.eq.s32.totalorder %s26, 0
        // Predicated region
        $region49: #{clip_text_embedder.1} parent=47 // pred_check
          %p385 = pneg %p384
        $region50: #{clip_text_embedder.1} parent=47 // pred_check_branch
          %387 = sbr.rel (%p385) target = $region52
        $region51: #{clip_text_embedder.1} parent=47 // pred_region
          %v388 = vld [vmem:[%s358] sm:$0xff]
          %vm389 = vcmask 261120
          %390 = vst.msk [vmem:[%s354] sm:$0xff] %vm389, %v388
        $region52: #{clip_text_embedder.1} parent=47 // pred_fallthru
          _
        %v391 = vld [vmem:[%s354] sm:$0xff]
        %v392 = vld [vmem:[%s382] sm:$0xff]
        %vm393 = vcmask 261120
        %v394 = vsel %vm393, %v391, 0.0
        %395 = vadd.xlane.f32.xlu0 %v394
        %v396 = vpop.xlane.xlu0 %395
        %v397 = vrcp.pop 32.0
        %v398 = vmul.f32 %v396, %v397
        %v399 = vsub.f32 %v391, %v398
        %v400 = vmul.f32 %v399, %v399
        %v401 = vsel %vm393, %v400, 0.0
        %402 = vadd.xlane.f32.xlu0 %v401
        %v403 = vpop.xlane.xlu0 %402
        %v404 = vmul.f32 %v403, %v397
        %v405 = vadd.f32 %v404, 1e-05
        %v406 = vrsqrt.pop %v405
        %v407 = vmul.f32 %v399, %v406
        %v408 = vpack.c.bf16 %v407, %v407
        %v409 = vld [vmem:[%s363] sm:$0xf]
        %v410 = vld [vmem:[%s363 + $0x4] sm:$0xf]
        %v411 = vld [vmem:[%s363 + $0x8] sm:$0xf]
        %v412 = vld [vmem:[%s363 + $0xc] sm:$0xf]
        %v413 = vlaneseq
        %v414 = vshrl.u32 %v413, 7
        %v415 = vsub.s32 0, %v414
        %v416 = vrot.slane %v392, %v415
        %v421 = vunpack.c.l.b16 %v409
        %v422 = vunpack.c.l.b16 %v410
        %v423 = vunpack.c.l.b16 %v411
        %v424 = vunpack.c.l.b16 %v412
        %v425 = vpack.c.b16 %v422, %v421
        %v426 = vpack.c.b16 %v424, %v423
        %v430 = vsel %vm393, %v408, 0
        %432 = vmatprep.subr.bf16.mxu0 0
        %433 = vmatpush1.bf16.msra.mxu0 %v425
        %434 = vmatprep.subr.bf16.mxu0 0
        %435 = vmatpush1.bf16.msra.mxu0 %v426
        %436 = vmatprep.subr.bf16.mxu0 0
        %437 = vmatpush1.bf16.msra.mxu0 0
        %438 = vmatprep.subr.bf16.mxu0 0
        %439 = vmatpush1.bf16.msra.mxu0 0
        %440 = vmatprep.subr.bf16.mxu0 0
        %441 = vmatpush1.bf16.msra.mxu0 0
        %442 = vmatprep.subr.bf16.mxu0 0
        %443 = vmatpush1.bf16.msra.mxu0 0
        %444 = vmatprep.subr.bf16.mxu0 0
        %445 = vmatpush1.bf16.msra.mxu0 0
        %446 = vmatprep.subr.bf16.mxu0 0
        %447 = vmatpush1.bf16.msra.mxu0 0
        %448 = vmatprep.subr.bf16.mxu0 0
        %449 = vmatpush1.bf16.msra.mxu0 0
        %450 = vmatprep.subr.bf16.mxu0 0
        %451 = vmatpush1.bf16.msra.mxu0 0
        %452 = vmatprep.subr.bf16.mxu0 0
        %453 = vmatpush1.bf16.msra.mxu0 0
        %454 = vmatprep.subr.bf16.mxu0 0
        %455 = vmatpush1.bf16.msra.mxu0 0
        %456 = vmatprep.subr.bf16.mxu0 0
        %457 = vmatpush1.bf16.msra.mxu0 0
        %458 = vmatprep.subr.bf16.mxu0 0
        %459 = vmatpush1.bf16.msra.mxu0 0
        %460 = vmatprep.subr.bf16.mxu0 0
        %461 = vmatpush1.bf16.msra.mxu0 0
        %462 = vmatprep.subr.bf16.mxu0 0
        %463 = vmatpush1.bf16.msra.mxu0 0
        %464 = vmatprep.mubr.bf16.mxu0 0
        %465 = vmatmul.mubr.bf16.gmra.mrb[0].mxu0 %v430
        %v466 = vpop.f32.mrb[0].mxu0
        %v467 = vadd.f32 %v416, %v466
        %v468 = vpop.f32.mrb[0].mxu0
        %v469 = vpop.f32.mrb[0].mxu0
        %v470 = vpop.f32.mrb[0].mxu0
        %471 = vdwg.mxu0
        %v472 = vlaneseq
        %v473 = vshrl.u32 %v472, 7
        %v474 = vlaneseq
        %v475 = vand.u32 %v474, 127
        %vm476 = vcmp.le.s32.totalorder %v475, %v473
        %v477 = vsel %vm476, 0.0, -1e+30
        %v478 = vpack.c.bf16 %v467, %v467
        %480 = vrot.lane.b32.xlu0 %v478, 96
        %v481 = vpop.permute.xlu0 %480
        %vm482 = vcmask 64512
        %v484 = vsel %vm482, %v478, 0
        %v487 = vsel %vm482, %v481, 0
        %489 = vmatprep.subr.bf16.mxu0 0
        %490 = vmatpush1.bf16.xpose.msra.mxu0 %v487
        %491 = vmatprep.subr.bf16.mxu0 0
        %492 = vmatpush1.bf16.xpose.msra.mxu0 0
        %493 = vmatprep.subr.bf16.mxu0 0
        %494 = vmatpush1.bf16.xpose.msra.mxu0 0
        %495 = vmatprep.subr.bf16.mxu0 0
        %496 = vmatpush1.bf16.xpose.msra.mxu0 0
        %497 = vmatprep.subr.bf16.mxu0 0
        %498 = vmatpush1.bf16.xpose.msra.mxu0 0
        %499 = vmatprep.subr.bf16.mxu0 0
        %500 = vmatpush1.bf16.xpose.msra.mxu0 0
        %501 = vmatprep.subr.bf16.mxu0 0
        %502 = vmatpush1.bf16.xpose.msra.mxu0 0
        %503 = vmatprep.subr.bf16.mxu0 0
        %504 = vmatpush1.bf16.xpose.msra.mxu0 0
        %505 = vmatprep.subr.bf16.mxu0 0
        %506 = vmatpush1.bf16.xpose.msra.mxu0 0
        %507 = vmatprep.subr.bf16.mxu0 0
        %508 = vmatpush1.bf16.xpose.msra.mxu0 0
        %509 = vmatprep.subr.bf16.mxu0 0
        %510 = vmatpush1.bf16.xpose.msra.mxu0 0
        %511 = vmatprep.subr.bf16.mxu0 0
        %512 = vmatpush1.bf16.xpose.msra.mxu0 0
        %513 = vmatprep.subr.bf16.mxu0 0
        %514 = vmatpush1.bf16.xpose.msra.mxu0 0
        %515 = vmatprep.subr.bf16.mxu0 0
        %516 = vmatpush1.bf16.xpose.msra.mxu0 0
        %517 = vmatprep.subr.bf16.mxu0 0
        %518 = vmatpush1.bf16.xpose.msra.mxu0 0
        %519 = vmatprep.subr.bf16.mxu0 0
        %520 = vmatpush1.bf16.xpose.msra.mxu0 0
        %521 = vmatprep.mubr.bf16.mxu0 0
        %522 = vmatmul.mubr.bf16.gmra.mrb[0].mxu0 %v484
        %v523 = vpop.f32.mrb[0].mxu0
        %v524 = vadd.f32 %v477, %v523
        %v525 = vpop.f32.mrb[0].mxu0
        %v526 = vpop.f32.mrb[0].mxu0
        %v527 = vpop.f32.mrb[0].mxu0
        %528 = vdwg.mxu0
        %v529 = vsel %vm482, %v524, -inf
        %530 = vmax.xlane.f32.xlu0 %v529
        %v531 = vpop.xlane.xlu0 %530
        %v532 = vsub.f32 %v524, %v531
        %v533 = vmul.f32 %v532, 1.442695
        %v534 = vpow.pop %v533
        %v535 = vsel %vm482, %v534, 0.0
        %536 = vadd.xlane.f32.xlu0 %v535
        %v537 = vpop.xlane.xlu0 %536
        %v538 = vrcp.pop %v537
        %v539 = vmul.f32 %v534, %v538
        %v540 = vpack.c.bf16 %v539, %v539
        %541 = vrot.lane.b32.xlu0 %v478, 64
        %v542 = vpop.permute.xlu0 %541
        %v544 = vsel %vm482, %v540, 0
        %vm546 = vcmask 1043456
        %v548 = vsel %vm546, %v542, 0
        %550 = vmatprep.subr.bf16.mxu0 0
        %551 = vmatpush1.bf16.msra.mxu0 %v548
        %552 = vmatprep.subr.bf16.mxu0 0
        %553 = vmatpush1.bf16.msra.mxu0 0
        %554 = vmatprep.subr.bf16.mxu0 0
        %555 = vmatpush1.bf16.msra.mxu0 0
        %556 = vmatprep.subr.bf16.mxu0 0
        %557 = vmatpush1.bf16.msra.mxu0 0
        %558 = vmatprep.subr.bf16.mxu0 0
        %559 = vmatpush1.bf16.msra.mxu0 0
        %560 = vmatprep.subr.bf16.mxu0 0
        %561 = vmatpush1.bf16.msra.mxu0 0
        %562 = vmatprep.subr.bf16.mxu0 0
        %563 = vmatpush1.bf16.msra.mxu0 0
        %564 = vmatprep.subr.bf16.mxu0 0
        %565 = vmatpush1.bf16.msra.mxu0 0
        %566 = vmatprep.subr.bf16.mxu0 0
        %567 = vmatpush1.bf16.msra.mxu0 0
        %568 = vmatprep.subr.bf16.mxu0 0
        %569 = vmatpush1.bf16.msra.mxu0 0
        %570 = vmatprep.subr.bf16.mxu0 0
        %571 = vmatpush1.bf16.msra.mxu0 0
        %572 = vmatprep.subr.bf16.mxu0 0
        %573 = vmatpush1.bf16.msra.mxu0 0
        %574 = vmatprep.subr.bf16.mxu0 0
        %575 = vmatpush1.bf16.msra.mxu0 0
        %576 = vmatprep.subr.bf16.mxu0 0
        %577 = vmatpush1.bf16.msra.mxu0 0
        %578 = vmatprep.subr.bf16.mxu0 0
        %579 = vmatpush1.bf16.msra.mxu0 0
        %580 = vmatprep.subr.bf16.mxu0 0
        %581 = vmatpush1.bf16.msra.mxu0 0
        %582 = vmatprep.mubr.bf16.mxu0 0
        %583 = vmatmul.mubr.bf16.gmra.mrb[0].mxu0 %v544
        %v584 = vpop.f32.mrb[0].mxu0
        %v585 = vadd.f32 0.0, %v584
        %v586 = vpop.f32.mrb[0].mxu0
        %v587 = vpop.f32.mrb[0].mxu0
        %v588 = vpop.f32.mrb[0].mxu0
        %589 = vdwg.mxu0
        %590 = vst.msk [vmem:[#allocation2] sm:$0xff] %vm482, %v585
        %591 = vrot.lane.b32.xlu0 %v478, 120
        %v592 = vpop.permute.xlu0 %591
        %593 = vrot.lane.b32.xlu0 %v478, 88
        %v594 = vpop.permute.xlu0 %593
        %v596 = vsel %vm482, %v592, 0
        %v599 = vsel %vm482, %v594, 0
        %601 = vmatprep.subr.bf16.mxu0 0
        %602 = vmatpush1.bf16.xpose.msra.mxu0 %v599
        %603 = vmatprep.subr.bf16.mxu0 0
        %604 = vmatpush1.bf16.xpose.msra.mxu0 0
        %605 = vmatprep.subr.bf16.mxu0 0
        %606 = vmatpush1.bf16.xpose.msra.mxu0 0
        %607 = vmatprep.subr.bf16.mxu0 0
        %608 = vmatpush1.bf16.xpose.msra.mxu0 0
        %609 = vmatprep.subr.bf16.mxu0 0
        %610 = vmatpush1.bf16.xpose.msra.mxu0 0
        %611 = vmatprep.subr.bf16.mxu0 0
        %612 = vmatpush1.bf16.xpose.msra.mxu0 0
        %613 = vmatprep.subr.bf16.mxu0 0
        %614 = vmatpush1.bf16.xpose.msra.mxu0 0
        %615 = vmatprep.subr.bf16.mxu0 0
        %616 = vmatpush1.bf16.xpose.msra.mxu0 0
        %617 = vmatprep.subr.bf16.mxu0 0
        %618 = vmatpush1.bf16.xpose.msra.mxu0 0
        %619 = vmatprep.subr.bf16.mxu0 0
        %620 = vmatpush1.bf16.xpose.msra.mxu0 0
        %621 = vmatprep.subr.bf16.mxu0 0
        %622 = vmatpush1.bf16.xpose.msra.mxu0 0
        %623 = vmatprep.subr.bf16.mxu0 0
        %624 = vmatpush1.bf16.xpose.msra.mxu0 0
        %625 = vmatprep.subr.bf16.mxu0 0
        %626 = vmatpush1.bf16.xpose.msra.mxu0 0
        %627 = vmatprep.subr.bf16.mxu0 0
        %628 = vmatpush1.bf16.xpose.msra.mxu0 0
        %629 = vmatprep.subr.bf16.mxu0 0
        %630 = vmatpush1.bf16.xpose.msra.mxu0 0
        %631 = vmatprep.subr.bf16.mxu0 0
        %632 = vmatpush1.bf16.xpose.msra.mxu0 0
        %633 = vmatprep.mubr.bf16.mxu0 0
        %634 = vmatmul.mubr.bf16.gmra.mrb[0].mxu0 %v596
        %v635 = vpop.f32.mrb[0].mxu0
        %v636 = vadd.f32 %v477, %v635
        %v637 = vpop.f32.mrb[0].mxu0
        %v638 = vpop.f32.mrb[0].mxu0
        %v639 = vpop.f32.mrb[0].mxu0
        %640 = vdwg.mxu0
        %v641 = vsel %vm482, %v636, -inf
        %642 = vmax.xlane.f32.xlu0 %v641
        %v643 = vpop.xlane.xlu0 %642
        %v644 = vsub.f32 %v636, %v643
        %v645 = vmul.f32 %v644, 1.442695
        %v646 = vpow.pop %v645
        %v647 = vsel %vm482, %v646, 0.0
        %648 = vadd.xlane.f32.xlu0 %v647
        %v649 = vpop.xlane.xlu0 %648
        %v650 = vrcp.pop %v649
        %v651 = vmul.f32 %v646, %v650
        %v652 = vpack.c.bf16 %v651, %v651
        %653 = vrot.lane.b32.xlu0 %v478, 56
        %v654 = vpop.permute.xlu0 %653
        %v656 = vsel %vm482, %v652, 0
        %v659 = vsel %vm546, %v654, 0
        %661 = vmatprep.subr.bf16.mxu0 0
        %662 = vmatpush1.bf16.msra.mxu0 %v659
        %663 = vmatprep.subr.bf16.mxu0 0
        %664 = vmatpush1.bf16.msra.mxu0 0
        %665 = vmatprep.subr.bf16.mxu0 0
        %666 = vmatpush1.bf16.msra.mxu0 0
        %667 = vmatprep.subr.bf16.mxu0 0
        %668 = vmatpush1.bf16.msra.mxu0 0
        %669 = vmatprep.subr.bf16.mxu0 0
        %670 = vmatpush1.bf16.msra.mxu0 0
        %671 = vmatprep.subr.bf16.mxu0 0
        %672 = vmatpush1.bf16.msra.mxu0 0
        %673 = vmatprep.subr.bf16.mxu0 0
        %674 = vmatpush1.bf16.msra.mxu0 0
        %675 = vmatprep.subr.bf16.mxu0 0
        %676 = vmatpush1.bf16.msra.mxu0 0
        %677 = vmatprep.subr.bf16.mxu0 0
        %678 = vmatpush1.bf16.msra.mxu0 0
        %679 = vmatprep.subr.bf16.mxu0 0
        %680 = vmatpush1.bf16.msra.mxu0 0
        %681 = vmatprep.subr.bf16.mxu0 0
        %682 = vmatpush1.bf16.msra.mxu0 0
        %683 = vmatprep.subr.bf16.mxu0 0
        %684 = vmatpush1.bf16.msra.mxu0 0
        %685 = vmatprep.subr.bf16.mxu0 0
        %686 = vmatpush1.bf16.msra.mxu0 0
        %687 = vmatprep.subr.bf16.mxu0 0
        %688 = vmatpush1.bf16.msra.mxu0 0
        %689 = vmatprep.subr.bf16.mxu0 0
        %690 = vmatpush1.bf16.msra.mxu0 0
        %691 = vmatprep.subr.bf16.mxu0 0
        %692 = vmatpush1.bf16.msra.mxu0 0
        %693 = vmatprep.mubr.bf16.mxu0 0
        %694 = vmatmul.mubr.bf16.gmra.mrb[0].mxu0 %v656
        %v695 = vpop.f32.mrb[0].mxu0
        %v696 = vadd.f32 0.0, %v695
        %v697 = vpop.f32.mrb[0].mxu0
        %v698 = vpop.f32.mrb[0].mxu0
        %v699 = vpop.f32.mrb[0].mxu0
        %700 = vdwg.mxu0
        %702 = vrot.lane.b32.xlu0 %v696, 8
        %v703 = vpop.permute.xlu0 %702
        %vm705 = vcmask 130112
        %706 = vst.msk [vmem:[#allocation2] sm:$0xff] %vm705, %v703
        %707 = vrot.lane.b32.xlu0 %v478, 112
        %v708 = vpop.permute.xlu0 %707
        %709 = vrot.lane.b32.xlu0 %v478, 80
        %v710 = vpop.permute.xlu0 %709
        %v712 = vsel %vm482, %v708, 0
        %v715 = vsel %vm482, %v710, 0
        %717 = vmatprep.subr.bf16.mxu0 0
        %718 = vmatpush1.bf16.xpose.msra.mxu0 %v715
        %719 = vmatprep.subr.bf16.mxu0 0
        %720 = vmatpush1.bf16.xpose.msra.mxu0 0
        %721 = vmatprep.subr.bf16.mxu0 0
        %722 = vmatpush1.bf16.xpose.msra.mxu0 0
        %723 = vmatprep.subr.bf16.mxu0 0
        %724 = vmatpush1.bf16.xpose.msra.mxu0 0
        %725 = vmatprep.subr.bf16.mxu0 0
        %726 = vmatpush1.bf16.xpose.msra.mxu0 0
        %727 = vmatprep.subr.bf16.mxu0 0
        %728 = vmatpush1.bf16.xpose.msra.mxu0 0
        %729 = vmatprep.subr.bf16.mxu0 0
        %730 = vmatpush1.bf16.xpose.msra.mxu0 0
        %731 = vmatprep.subr.bf16.mxu0 0
        %732 = vmatpush1.bf16.xpose.msra.mxu0 0
        %733 = vmatprep.subr.bf16.mxu0 0
        %734 = vmatpush1.bf16.xpose.msra.mxu0 0
        %735 = vmatprep.subr.bf16.mxu0 0
        %736 = vmatpush1.bf16.xpose.msra.mxu0 0
        %737 = vmatprep.subr.bf16.mxu0 0
        %738 = vmatpush1.bf16.xpose.msra.mxu0 0
        %739 = vmatprep.subr.bf16.mxu0 0
        %740 = vmatpush1.bf16.xpose.msra.mxu0 0
        %741 = vmatprep.subr.bf16.mxu0 0
        %742 = vmatpush1.bf16.xpose.msra.mxu0 0
        %743 = vmatprep.subr.bf16.mxu0 0
        %744 = vmatpush1.bf16.xpose.msra.mxu0 0
        %745 = vmatprep.subr.bf16.mxu0 0
        %746 = vmatpush1.bf16.xpose.msra.mxu0 0
        %747 = vmatprep.subr.bf16.mxu0 0
        %748 = vmatpush1.bf16.xpose.msra.mxu0 0
        %749 = vmatprep.mubr.bf16.mxu0 0
        %750 = vmatmul.mubr.bf16.gmra.mrb[0].mxu0 %v712
        %v751 = vpop.f32.mrb[0].mxu0
        %v752 = vadd.f32 %v477, %v751
        %v753 = vpop.f32.mrb[0].mxu0
        %v754 = vpop.f32.mrb[0].mxu0
        %v755 = vpop.f32.mrb[0].mxu0
        %756 = vdwg.mxu0
        %v757 = vsel %vm482, %v752, -inf
        %758 = vmax.xlane.f32.xlu0 %v757
        %v759 = vpop.xlane.xlu0 %758
        %v760 = vsub.f32 %v752, %v759
        %v761 = vmul.f32 %v760, 1.442695
        %v762 = vpow.pop %v761
        %v763 = vsel %vm482, %v762, 0.0
        %764 = vadd.xlane.f32.xlu0 %v763
        %v765 = vpop.xlane.xlu0 %764
        %v766 = vrcp.pop %v765
        %v767 = vmul.f32 %v762, %v766
        %v768 = vpack.c.bf16 %v767, %v767
        %769 = vrot.lane.b32.xlu0 %v478, 48
        %v770 = vpop.permute.xlu0 %769
        %v772 = vsel %vm482, %v768, 0
        %v775 = vsel %vm546, %v770, 0
        %777 = vmatprep.subr.bf16.mxu0 0
        %778 = vmatpush1.bf16.msra.mxu0 %v775
        %779 = vmatprep.subr.bf16.mxu0 0
        %780 = vmatpush1.bf16.msra.mxu0 0
        %781 = vmatprep.subr.bf16.mxu0 0
        %782 = vmatpush1.bf16.msra.mxu0 0
        %783 = vmatprep.subr.bf16.mxu0 0
        %784 = vmatpush1.bf16.msra.mxu0 0
        %785 = vmatprep.subr.bf16.mxu0 0
        %786 = vmatpush1.bf16.msra.mxu0 0
        %787 = vmatprep.subr.bf16.mxu0 0
        %788 = vmatpush1.bf16.msra.mxu0 0
        %789 = vmatprep.subr.bf16.mxu0 0
        %790 = vmatpush1.bf16.msra.mxu0 0
        %791 = vmatprep.subr.bf16.mxu0 0
        %792 = vmatpush1.bf16.msra.mxu0 0
        %793 = vmatprep.subr.bf16.mxu0 0
        %794 = vmatpush1.bf16.msra.mxu0 0
        %795 = vmatprep.subr.bf16.mxu0 0
        %796 = vmatpush1.bf16.msra.mxu0 0
        %797 = vmatprep.subr.bf16.mxu0 0
        %798 = vmatpush1.bf16.msra.mxu0 0
        %799 = vmatprep.subr.bf16.mxu0 0
        %800 = vmatpush1.bf16.msra.mxu0 0
        %801 = vmatprep.subr.bf16.mxu0 0
        %802 = vmatpush1.bf16.msra.mxu0 0
        %803 = vmatprep.subr.bf16.mxu0 0
        %804 = vmatpush1.bf16.msra.mxu0 0
        %805 = vmatprep.subr.bf16.mxu0 0
        %806 = vmatpush1.bf16.msra.mxu0 0
        %807 = vmatprep.subr.bf16.mxu0 0
        %808 = vmatpush1.bf16.msra.mxu0 0
        %809 = vmatprep.mubr.bf16.mxu0 0
        %810 = vmatmul.mubr.bf16.gmra.mrb[0].mxu0 %v772
        %v811 = vpop.f32.mrb[0].mxu0
        %v812 = vadd.f32 0.0, %v811
        %v813 = vpop.f32.mrb[0].mxu0
        %v814 = vpop.f32.mrb[0].mxu0
        %v815 = vpop.f32.mrb[0].mxu0
        %816 = vdwg.mxu0
        %818 = vrot.lane.b32.xlu0 %v812, 16
        %v819 = vpop.permute.xlu0 %818
        %vm821 = vcmask 195712
        %822 = vst.msk [vmem:[#allocation2] sm:$0xff] %vm821, %v819
        %823 = vrot.lane.b32.xlu0 %v478, 104
        %v824 = vpop.permute.xlu0 %823
        %825 = vrot.lane.b32.xlu0 %v478, 72
        %v826 = vpop.permute.xlu0 %825
        %v828 = vsel %vm482, %v824, 0
        %v831 = vsel %vm482, %v826, 0
        %833 = vmatprep.subr.bf16.mxu0 0
        %834 = vmatpush1.bf16.xpose.msra.mxu0 %v831
        %835 = vmatprep.subr.bf16.mxu0 0
        %836 = vmatpush1.bf16.xpose.msra.mxu0 0
        %837 = vmatprep.subr.bf16.mxu0 0
        %838 = vmatpush1.bf16.xpose.msra.mxu0 0
        %839 = vmatprep.subr.bf16.mxu0 0
        %840 = vmatpush1.bf16.xpose.msra.mxu0 0
        %841 = vmatprep.subr.bf16.mxu0 0
        %842 = vmatpush1.bf16.xpose.msra.mxu0 0
        %843 = vmatprep.subr.bf16.mxu0 0
        %844 = vmatpush1.bf16.xpose.msra.mxu0 0
        %845 = vmatprep.subr.bf16.mxu0 0
        %846 = vmatpush1.bf16.xpose.msra.mxu0 0
        %847 = vmatprep.subr.bf16.mxu0 0
        %848 = vmatpush1.bf16.xpose.msra.mxu0 0
        %849 = vmatprep.subr.bf16.mxu0 0
        %850 = vmatpush1.bf16.xpose.msra.mxu0 0
        %851 = vmatprep.subr.bf16.mxu0 0
        %852 = vmatpush1.bf16.xpose.msra.mxu0 0
        %853 = vmatprep.subr.bf16.mxu0 0
        %854 = vmatpush1.bf16.xpose.msra.mxu0 0
        %855 = vmatprep.subr.bf16.mxu0 0
        %856 = vmatpush1.bf16.xpose.msra.mxu0 0
        %857 = vmatprep.subr.bf16.mxu0 0
        %858 = vmatpush1.bf16.xpose.msra.mxu0 0
        %859 = vmatprep.subr.bf16.mxu0 0
        %860 = vmatpush1.bf16.xpose.msra.mxu0 0
        %861 = vmatprep.subr.bf16.mxu0 0
        %862 = vmatpush1.bf16.xpose.msra.mxu0 0
        %863 = vmatprep.subr.bf16.mxu0 0
        %864 = vmatpush1.bf16.xpose.msra.mxu0 0
        %865 = vmatprep.mubr.bf16.mxu0 0
        %866 = vmatmul.mubr.bf16.gmra.mrb[0].mxu0 %v828
        %v867 = vpop.f32.mrb[0].mxu0
        %v868 = vadd.f32 %v477, %v867
        %v869 = vpop.f32.mrb[0].mxu0
        %v870 = vpop.f32.mrb[0].mxu0
        %v871 = vpop.f32.mrb[0].mxu0
        %872 = vdwg.mxu0
        %v873 = vsel %vm482, %v868, -inf
        %874 = vmax.xlane.f32.xlu0 %v873
        %v875 = vpop.xlane.xlu0 %874
        %v876 = vsub.f32 %v868, %v875
        %v877 = vmul.f32 %v876, 1.442695
        %v878 = vpow.pop %v877
        %v879 = vsel %vm482, %v878, 0.0
        %880 = vadd.xlane.f32.xlu0 %v879
        %v881 = vpop.xlane.xlu0 %880
        %v882 = vrcp.pop %v881
        %v883 = vmul.f32 %v878, %v882
        %v884 = vpack.c.bf16 %v883, %v883
        %885 = vrot.lane.b32.xlu0 %v478, 40
        %v886 = vpop.permute.xlu0 %885
        %v888 = vsel %vm482, %v884, 0
        %v891 = vsel %vm546, %v886, 0
        %893 = vmatprep.subr.bf16.mxu0 0
        %894 = vmatpush1.bf16.msra.mxu0 %v891
        %895 = vmatprep.subr.bf16.mxu0 0
        %896 = vmatpush1.bf16.msra.mxu0 0
        %897 = vmatprep.subr.bf16.mxu0 0
        %898 = vmatpush1.bf16.msra.mxu0 0
        %899 = vmatprep.subr.bf16.mxu0 0
        %900 = vmatpush1.bf16.msra.mxu0 0
        %901 = vmatprep.subr.bf16.mxu0 0
        %902 = vmatpush1.bf16.msra.mxu0 0
        %903 = vmatprep.subr.bf16.mxu0 0
        %904 = vmatpush1.bf16.msra.mxu0 0
        %905 = vmatprep.subr.bf16.mxu0 0
        %906 = vmatpush1.bf16.msra.mxu0 0
        %907 = vmatprep.subr.bf16.mxu0 0
        %908 = vmatpush1.bf16.msra.mxu0 0
        %909 = vmatprep.subr.bf16.mxu0 0
        %910 = vmatpush1.bf16.msra.mxu0 0
        %911 = vmatprep.subr.bf16.mxu0 0
        %912 = vmatpush1.bf16.msra.mxu0 0
        %913 = vmatprep.subr.bf16.mxu0 0
        %914 = vmatpush1.bf16.msra.mxu0 0
        %915 = vmatprep.subr.bf16.mxu0 0
        %916 = vmatpush1.bf16.msra.mxu0 0
        %917 = vmatprep.subr.bf16.mxu0 0
        %918 = vmatpush1.bf16.msra.mxu0 0
        %919 = vmatprep.subr.bf16.mxu0 0
        %920 = vmatpush1.bf16.msra.mxu0 0
        %921 = vmatprep.subr.bf16.mxu0 0
        %922 = vmatpush1.bf16.msra.mxu0 0
        %923 = vmatprep.subr.bf16.mxu0 0
        %924 = vmatpush1.bf16.msra.mxu0 0
        %925 = vmatprep.mubr.bf16.mxu0 0
        %926 = vmatmul.mubr.bf16.gmra.mrb[0].mxu0 %v888
        %v927 = vpop.f32.mrb[0].mxu0
        %v928 = vadd.f32 0.0, %v927
        %v929 = vpop.f32.mrb[0].mxu0
        %v930 = vpop.f32.mrb[0].mxu0
        %v931 = vpop.f32.mrb[0].mxu0
        %932 = vdwg.mxu0
        %934 = vrot.lane.b32.xlu0 %v928, 24
        %v935 = vpop.permute.xlu0 %934
        %vm937 = vcmask 261312
        %938 = vst.msk [vmem:[#allocation2] sm:$0xff] %vm937, %v935
        %v939 = vld [vmem:[#allocation2] sm:$0xff]
        %v940 = vpack.c.bf16 %v939, %v939
        %v941 = vld [vmem:[%s368] sm:$0xf]
        %v942 = vld [vmem:[%s368 + $0x4] sm:$0xf]
        %v943 = vld [vmem:[%s368 + $0x8] sm:$0xf]
        %v944 = vld [vmem:[%s368 + $0xc] sm:$0xf]
        %v945 = vlaneseq
        %v946 = vshrl.u32 %v945, 7
        %v947 = vsub.s32 1, %v946
        %v948 = vrot.slane %v392, %v947
        %v953 = vunpack.c.l.b16 %v941
        %v954 = vunpack.c.l.b16 %v942
        %v955 = vunpack.c.l.b16 %v943
        %v956 = vunpack.c.l.b16 %v944
        %v957 = vpack.c.b16 %v954, %v953
        %v958 = vpack.c.b16 %v956, %v955
        %v962 = vsel %vm393, %v940, 0
        %964 = vmatprep.subr.bf16.mxu0 0
        %965 = vmatpush1.bf16.msra.mxu0 %v957
        %966 = vmatprep.subr.bf16.mxu0 0
        %967 = vmatpush1.bf16.msra.mxu0 %v958
        %968 = vmatprep.subr.bf16.mxu0 0
        %969 = vmatpush1.bf16.msra.mxu0 0
        %970 = vmatprep.subr.bf16.mxu0 0
        %971 = vmatpush1.bf16.msra.mxu0 0
        %972 = vmatprep.subr.bf16.mxu0 0
        %973 = vmatpush1.bf16.msra.mxu0 0
        %974 = vmatprep.subr.bf16.mxu0 0
        %975 = vmatpush1.bf16.msra.mxu0 0
        %976 = vmatprep.subr.bf16.mxu0 0
        %977 = vmatpush1.bf16.msra.mxu0 0
        %978 = vmatprep.subr.bf16.mxu0 0
        %979 = vmatpush1.bf16.msra.mxu0 0
        %980 = vmatprep.subr.bf16.mxu0 0
        %981 = vmatpush1.bf16.msra.mxu0 0
        %982 = vmatprep.subr.bf16.mxu0 0
        %983 = vmatpush1.bf16.msra.mxu0 0
        %984 = vmatprep.subr.bf16.mxu0 0
        %985 = vmatpush1.bf16.msra.mxu0 0
        %986 = vmatprep.subr.bf16.mxu0 0
        %987 = vmatpush1.bf16.msra.mxu0 0
        %988 = vmatprep.subr.bf16.mxu0 0
        %989 = vmatpush1.bf16.msra.mxu0 0
        %990 = vmatprep.subr.bf16.mxu0 0
        %991 = vmatpush1.bf16.msra.mxu0 0
        %992 = vmatprep.subr.bf16.mxu0 0
        %993 = vmatpush1.bf16.msra.mxu0 0
        %994 = vmatprep.subr.bf16.mxu0 0
        %995 = vmatpush1.bf16.msra.mxu0 0
        %996 = vmatprep.mubr.bf16.mxu0 0
        %997 = vmatmul.mubr.bf16.gmra.mrb[0].mxu0 %v962
        %v998 = vpop.f32.mrb[0].mxu0
        %v999 = vadd.f32 %v948, %v998
        %v1000 = vpop.f32.mrb[0].mxu0
        %v1001 = vpop.f32.mrb[0].mxu0
        %v1002 = vpop.f32.mrb[0].mxu0
        %1003 = vdwg.mxu0
        %v1004 = vadd.f32 %v391, %v999
        %v1005 = vsel %vm393, %v1004, 0.0
        %1006 = vadd.xlane.f32.xlu0 %v1005
        %v1007 = vpop.xlane.xlu0 %1006
        %v1008 = vmul.f32 %v1007, %v397
        %v1009 = vsub.f32 %v1004, %v1008
        %v1010 = vmul.f32 %v1009, %v1009
        %v1011 = vsel %vm393, %v1010, 0.0
        %1012 = vadd.xlane.f32.xlu0 %v1011
        %v1013 = vpop.xlane.xlu0 %1012
        %v1014 = vmul.f32 %v1013, %v397
        %v1015 = vadd.f32 %v1014, 1e-05
        %v1016 = vrsqrt.pop %v1015
        %v1017 = vmul.f32 %v1009, %v1016
        %v1018 = vpack.c.bf16 %v1017, %v1017
        %v1019 = vld [vmem:[%s373] sm:$0xf]
        %v1020 = vld [vmem:[%s373 + $0x4] sm:$0xf]
        %v1021 = vld [vmem:[%s373 + $0x8] sm:$0xf]
        %v1022 = vld [vmem:[%s373 + $0xc] sm:$0xf]
        %v1023 = vlaneseq
        %v1024 = vshrl.u32 %v1023, 7
        %v1025 = vsub.s32 2, %v1024
        %v1026 = vrot.slane %v392, %v1025
        %v1031 = vunpack.c.l.b16 %v1019
        %v1032 = vunpack.c.l.b16 %v1020
        %v1033 = vunpack.c.l.b16 %v1021
        %v1034 = vunpack.c.l.b16 %v1022
        %v1035 = vpack.c.b16 %v1032, %v1031
        %v1036 = vpack.c.b16 %v1034, %v1033
        %v1040 = vsel %vm393, %v1018, 0
        %1042 = vmatprep.subr.bf16.mxu0 0
        %1043 = vmatpush1.bf16.msra.mxu0 %v1035
        %1044 = vmatprep.subr.bf16.mxu0 0
        %1045 = vmatpush1.bf16.msra.mxu0 %v1036
        %1046 = vmatprep.subr.bf16.mxu0 0
        %1047 = vmatpush1.bf16.msra.mxu0 0
        %1048 = vmatprep.subr.bf16.mxu0 0
        %1049 = vmatpush1.bf16.msra.mxu0 0
        %1050 = vmatprep.subr.bf16.mxu0 0
        %1051 = vmatpush1.bf16.msra.mxu0 0
        %1052 = vmatprep.subr.bf16.mxu0 0
        %1053 = vmatpush1.bf16.msra.mxu0 0
        %1054 = vmatprep.subr.bf16.mxu0 0
        %1055 = vmatpush1.bf16.msra.mxu0 0
        %1056 = vmatprep.subr.bf16.mxu0 0
        %1057 = vmatpush1.bf16.msra.mxu0 0
        %1058 = vmatprep.subr.bf16.mxu0 0
        %1059 = vmatpush1.bf16.msra.mxu0 0
        %1060 = vmatprep.subr.bf16.mxu0 0
        %1061 = vmatpush1.bf16.msra.mxu0 0
        %1062 = vmatprep.subr.bf16.mxu0 0
        %1063 = vmatpush1.bf16.msra.mxu0 0
        %1064 = vmatprep.subr.bf16.mxu0 0
        %1065 = vmatpush1.bf16.msra.mxu0 0
        %1066 = vmatprep.subr.bf16.mxu0 0
        %1067 = vmatpush1.bf16.msra.mxu0 0
        %1068 = vmatprep.subr.bf16.mxu0 0
        %1069 = vmatpush1.bf16.msra.mxu0 0
        %1070 = vmatprep.subr.bf16.mxu0 0
        %1071 = vmatpush1.bf16.msra.mxu0 0
        %1072 = vmatprep.subr.bf16.mxu0 0
        %1073 = vmatpush1.bf16.msra.mxu0 0
        %1074 = vmatprep.mubr.bf16.mxu0 0
        %1075 = vmatmul.mubr.bf16.gmra.mrb[0].mxu0 %v1040
        %v1076 = vpop.f32.mrb[0].mxu0
        %v1077 = vadd.f32 %v1026, %v1076
        %v1078 = vpop.f32.mrb[0].mxu0
        %v1079 = vpop.f32.mrb[0].mxu0
        %v1080 = vpop.f32.mrb[0].mxu0
        %1081 = vdwg.mxu0
        %v1082 = vmul.f32 %v1077, 1.702
        %v1083 = vxor.u32 %v1082, 2147483648
        %v1084 = vmul.f32 %v1083, 1.442695
        %v1085 = vpow.pop %v1084
        %v1086 = vadd.f32 %v1085, 1.0
        %v1087 = vrcp.pop %v1086
        %v1088 = vmul.f32 1.0, %v1087
        %v1089 = vmul.f32 %v1077, %v1088
        %v1090 = vpack.c.bf16 %v1089, %v1089
        %v1091 = vld [vmem:[%s378] sm:$0xf]
        %v1092 = vld [vmem:[%s378 + $0x4] sm:$0xf]
        %v1093 = vld [vmem:[%s378 + $0x8] sm:$0xf]
        %v1094 = vld [vmem:[%s378 + $0xc] sm:$0xf]
        %v1095 = vld [vmem:[%s378 + $0x10] sm:$0xf]
        %v1096 = vld [vmem:[%s378 + $0x14] sm:$0xf]
        %v1097 = vld [vmem:[%s378 + $0x18] sm:$0xf]
        %v1098 = vld [vmem:[%s378 + $0x1c] sm:$0xf]
        %v1099 = vld [vmem:[%s378 + $0x20] sm:$0xf]
        %v1100 = vld [vmem:[%s378 + $0x24] sm:$0xf]
        %v1101 = vld [vmem:[%s378 + $0x28] sm:$0xf]
        %v1102 = vld [vmem:[%s378 + $0x2c] sm:$0xf]
        %v1103 = vld [vmem:[%s378 + $0x30] sm:$0xf]
        %v1104 = vld [vmem:[%s378 + $0x34] sm:$0xf]
        %v1105 = vld [vmem:[%s378 + $0x38] sm:$0xf]
        %v1106 = vld [vmem:[%s378 + $0x3c] sm:$0xf]
        %v1107 = vlaneseq
        %v1108 = vshrl.u32 %v1107, 7
        %v1109 = vsub.s32 3, %v1108
        %v1110 = vrot.slane %v392, %v1109
        %v1127 = vunpack.c.l.b16 %v1091
        %v1128 = vunpack.c.l.b16 %v1092
        %v1129 = vunpack.c.l.b16 %v1093
        %v1130 = vunpack.c.l.b16 %v1094
        %v1131 = vunpack.c.l.b16 %v1095
        %v1132 = vunpack.c.l.b16 %v1096
        %v1133 = vunpack.c.l.b16 %v1097
        %v1134 = vunpack.c.l.b16 %v1098
        %v1135 = vunpack.c.l.b16 %v1099
        %v1136 = vunpack.c.l.b16 %v1100
        %v1137 = vunpack.c.l.b16 %v1101
        %v1138 = vunpack.c.l.b16 %v1102
        %v1139 = vunpack.c.l.b16 %v1103
        %v1140 = vunpack.c.l.b16 %v1104
        %v1141 = vunpack.c.l.b16 %v1105
        %v1142 = vunpack.c.l.b16 %v1106
        %v1143 = vpack.c.b16 %v1128, %v1127
        %v1144 = vpack.c.b16 %v1130, %v1129
        %v1145 = vpack.c.b16 %v1132, %v1131
        %v1146 = vpack.c.b16 %v1134, %v1133
        %v1147 = vpack.c.b16 %v1136, %v1135
        %v1148 = vpack.c.b16 %v1138, %v1137
        %v1149 = vpack.c.b16 %v1140, %v1139
        %v1150 = vpack.c.b16 %v1142, %v1141
        %1159 = vmatprep.subr.bf16.mxu0 0
        %1160 = vmatpush1.bf16.msra.mxu0 %v1143
        %1161 = vmatprep.subr.bf16.mxu0 0
        %1162 = vmatpush1.bf16.msra.mxu0 %v1144
        %1163 = vmatprep.subr.bf16.mxu0 0
        %1164 = vmatpush1.bf16.msra.mxu0 %v1145
        %1165 = vmatprep.subr.bf16.mxu0 0
        %1166 = vmatpush1.bf16.msra.mxu0 %v1146
        %1167 = vmatprep.subr.bf16.mxu0 0
        %1168 = vmatpush1.bf16.msra.mxu0 %v1147
        %1169 = vmatprep.subr.bf16.mxu0 0
        %1170 = vmatpush1.bf16.msra.mxu0 %v1148
        %1171 = vmatprep.subr.bf16.mxu0 0
        %1172 = vmatpush1.bf16.msra.mxu0 %v1149
        %1173 = vmatprep.subr.bf16.mxu0 0
        %1174 = vmatpush1.bf16.msra.mxu0 %v1150
        %1175 = vmatprep.subr.bf16.mxu0 0
        %1176 = vmatpush1.bf16.msra.mxu0 0
        %1177 = vmatprep.subr.bf16.mxu0 0
        %1178 = vmatpush1.bf16.msra.mxu0 0
        %1179 = vmatprep.subr.bf16.mxu0 0
        %1180 = vmatpush1.bf16.msra.mxu0 0
        %1181 = vmatprep.subr.bf16.mxu0 0
        %1182 = vmatpush1.bf16.msra.mxu0 0
        %1183 = vmatprep.subr.bf16.mxu0 0
        %1184 = vmatpush1.bf16.msra.mxu0 0
        %1185 = vmatprep.subr.bf16.mxu0 0
        %1186 = vmatpush1.bf16.msra.mxu0 0
        %1187 = vmatprep.subr.bf16.mxu0 0
        %1188 = vmatpush1.bf16.msra.mxu0 0
        %1189 = vmatprep.subr.bf16.mxu0 0
        %1190 = vmatpush1.bf16.msra.mxu0 0
        %1191 = vmatprep.mubr.bf16.mxu0 0
        %1192 = vmatmul.mubr.bf16.gmra.mrb[0].mxu0 %v1090
        %v1193 = vpop.f32.mrb[0].mxu0
        %v1194 = vadd.f32 %v1110, %v1193
        %v1195 = vpop.f32.mrb[0].mxu0
        %v1196 = vpop.f32.mrb[0].mxu0
        %v1197 = vpop.f32.mrb[0].mxu0
        %1198 = vdwg.mxu0
        %v1199 = vadd.f32 %v1004, %v1194
        %v1200 = vld [vmem:[%s6] sm:$0x3]
        %p1201 = scmp.eq.s32.totalorder %s26, 1
        // Predicated region
        $region53: #{clip_text_embedder.1} parent=47 // pred_check
          %p1202 = pneg %p1201
        $region54: #{clip_text_embedder.1} parent=47 // pred_check_branch
          %1204 = sbr.rel (%p1202) target = $region56
        $region55: #{clip_text_embedder.1} parent=47 // pred_region
          %v1205 = vsel %vm393, %v1199, 0.0
          %1206 = vadd.xlane.f32.xlu0 %v1205
          %v1207 = vpop.xlane.xlu0 %1206
          %v1208 = vmul.f32 %v1207, %v397
          %v1209 = vsub.f32 %v1199, %v1208
          %v1210 = vmul.f32 %v1209, %v1209
          %v1211 = vsel %vm393, %v1210, 0.0
          %1212 = vadd.xlane.f32.xlu0 %v1211
          %v1213 = vpop.xlane.xlu0 %1212
          %v1214 = vmul.f32 %v1213, %v397
          %v1215 = vadd.f32 %v1214, 1e-05
          %v1216 = vrsqrt.pop %v1215
          %v1217 = vmul.f32 %v1209, %v1216
          %v1218 = vlaneseq
          %v1219 = vshrl.u32 %v1218, 7
          %v1220 = vsub.s32 0, %v1219
          %v1221 = vrot.slane %v1200, %v1220
          %v1222 = vmul.f32 %v1217, %v1221
          %v1223 = vlaneseq
          %v1224 = vshrl.u32 %v1223, 7
          %v1225 = vsub.s32 1, %v1224
          %v1226 = vrot.slane %v1200, %v1225
          %v1227 = vadd.f32 %v1222, %v1226
          %1228 = vst.msk [vmem:[%s354] sm:$0xff] %vm393, %v1227
        $region56: #{clip_text_embedder.1} parent=47 // pred_fallthru
          _
        %p1229 = scmp.ne.s32.totalorder %s26, 1
        // Predicated region
        $region57: #{clip_text_embedder.1} parent=47 // pred_check
          %p1230 = pneg %p1229
        $region58: #{clip_text_embedder.1} parent=47 // pred_check_branch
          %1232 = sbr.rel (%p1230) target = $region60
        $region59: #{clip_text_embedder.1} parent=47 // pred_region
          %1233 = vst.msk [vmem:[%s354] sm:$0xff] %vm393, %v1199
        $region60: #{clip_text_embedder.1} parent=47 // pred_fallthru
          _
        %s1234 = sand.u32 %s218, 1
        %s1235 = scalar_lea.sflag [#allocation4], %s1234
        %s1236 = sand.u32 %s218, 1
        %s1237 = smul.addr %s1236, 8
        %s1238 = scalar_lea.vmem [#allocation3], %s1237
        // Predicated region
        $region61: #{clip_text_embedder.1} parent=47 // pred_check
          %p1239 = pneg %p228
        $region62: #{clip_text_embedder.1} parent=47 // pred_check_branch
          %1241 = sbr.rel (%p1239) target = $region64
        $region63: #{clip_text_embedder.1} parent=47 // pred_region
          %s1243 = ssub.s32 128, 128
          %1244 = vsyncadd %s1235, %s1243
          %s1245 = smul.addr %s25, 128
          %s1246 = scalar_lea.hbm %s7, %s1245
          %s1248 = sshll.u32 %s1238, 4
          %s1249 = int_to_ptr.vmem [resolvable:$true] %s1248
          %1251 = dma.vmem_to_hbm [thread:$0]  %s1249, 128, %s1246, %s1235
        $region64: #{clip_text_embedder.1} parent=47 // pred_fallthru
          _
      $region48: #{clip_text_embedder.1} parent=5 // pred_fallthru
        _
      %p1252 = scmp.le.s32.totalorder 2, %s16
      // Predicated region
      $region65: #{clip_text_embedder.1} parent=5 // pred_check
        %p1253 = pneg %p1252
      $region66: #{clip_text_embedder.1} parent=5 // pred_check_branch
        %1255 = sbr.rel (%p1253) target = $region68
      $region67: #{clip_text_embedder.1} parent=5 // pred_region
        %s1256 = ssub.s32 %s16, 2
        // Predicated region
        $region69: #{clip_text_embedder.1} parent=67 // pred_check
          %p1257 = pneg %p234
        $region70: #{clip_text_embedder.1} parent=67 // pred_check_branch
          %1259 = sbr.rel (%p1257) target = $region72
        $region71: #{clip_text_embedder.1} parent=67 // pred_region
          %s1260 = sand.u32 %s219, 1
          %s1261 = scalar_lea.sflag [#allocation4], %s1260
          %s1262 = sand.u32 %s219, 1
          %s1263 = smul.addr %s1262, 8
          %s1264 = scalar_lea.vmem [#allocation3], %s1263
          %1265 = dma.done %s1261, 128
        $region72: #{clip_text_embedder.1} parent=67 // pred_fallthru
          _
      $region68: #{clip_text_embedder.1} parent=5 // pred_fallthru
        _
    $region6: #{clip_text_embedder.1} parent=1 // loop_footer
      %s20 = sadd.s32 1, %s16
    $region7: #{clip_text_embedder.1} parent=1 // loop_footer_branch
      %15 = sbr.rel target = $region3
    $region8: #{clip_text_embedder.1} parent=1 // loop_exit
      _
    %1266 = vsyncpa [#allocation4], 1
    %s1267 = scalar_lea.sflag [#allocation4], 1
    %1268 = vsyncpa %s1267, 1

</llo_original>
